<compile_context>
chip_gen: v5e
topology: v5e:2x2
jax: 0.10.0
libtpu: 0.0.40
codegen_flags: <defaults>
</compile_context>

<pallas_src>
import jax
import jax.numpy as jnp
from jax import lax
from jax.experimental import pallas as pl
from jax.experimental.pallas import tpu as pltpu


# ---------------------------------------------------------------------------
# Pallas kernels
# ---------------------------------------------------------------------------
def _conv_relu_pool_kernel(p_ref, w_ref, b_ref, o_ref):
    """Fused conv(as GEMM) + bias + ReLU + 3x3/3 max-pool for one batch item.

    p_ref : (1, 9, M, K) im2col patches, tap-major (9 pool-window taps,
                         M pooled positions, K = 3*3*Cin), bf16
    w_ref : (K, N)       conv weight as GEMM matrix, bf16
    b_ref : (1, N)       conv bias, f32
    o_ref : (1, M, N)    pooled ReLU output, bf16
    """
    w = w_ref[...]
    acc = jnp.dot(p_ref[0, 0], w, preferred_element_type=jnp.float32)
    for t in range(1, p_ref.shape[1]):
        acc = jnp.maximum(
            acc, jnp.dot(p_ref[0, t], w, preferred_element_type=jnp.float32))
    # bias is per-channel (identical across taps) and ReLU is monotone, so
    # max-pool commutes with both.
    o_ref[0] = jnp.maximum(acc + b_ref[...], 0.0).astype(o_ref.dtype)


def _tail_kernel(p_ref, w2_ref, b2_ref, wfc_ref, bfc_ref, o_ref):
    """conv2 + ReLU + pool2 + NCHW flatten + fused fc1|fc2 + sigmoid/ELU(10).

    p_ref   : (1, 9, S, K2)  conv2 im2col patches (tap-major), bf16
    w2_ref  : (K2, 128)      conv2 weight, bf16
    b2_ref  : (1, 128)       conv2 bias, f32
    wfc_ref : (S, 128, 2D)   fused fc1|fc2 weight; rows pre-permuted so the
                             torch NCHW flatten is just sum_s h[s] @ wfc[s]
    bfc_ref : (1, 2D)        fused fc biases, f32
    o_ref   : (1, 1, 2D)     [sigmoid(fc1) | ELU_10(fc2)], f32
    """
    w2 = w2_ref[...]
    acc = jnp.dot(p_ref[0, 0], w2, preferred_element_type=jnp.float32)
    for t in range(1, p_ref.shape[1]):
        acc = jnp.maximum(
            acc, jnp.dot(p_ref[0, t], w2, preferred_element_type=jnp.float32))
    h = jnp.maximum(acc + b2_ref[...], 0.0)          # (S, 128) pooled conv2 out

    fc = jnp.dot(h[0:1, :], wfc_ref[0], preferred_element_type=jnp.float32)
    for s in range(1, h.shape[0]):
        fc = fc + jnp.dot(h[s:s + 1, :], wfc_ref[s],
                          preferred_element_type=jnp.float32)
    fc = fc + bfc_ref[...]                           # (1, 2D)

    d = o_ref.shape[2] // 2
    lane = lax.broadcasted_iota(jnp.int32, fc.shape, 1)
    mean = 1.0 / (1.0 + jnp.exp(-fc))                                  # sigmoid
    log_var = jnp.where(fc > 0.0, fc,
                        10.0 * (jnp.exp(jnp.minimum(fc, 0.0)) - 1.0))  # ELU(10)
    o_ref[0] = jnp.where(lane < d, mean, log_var).astype(o_ref.dtype)


# ---------------------------------------------------------------------------
# pallas_call wrappers
# ---------------------------------------------------------------------------
def conv_relu_pool(patches, w_mat, bias):
    B, T, M, K = patches.shape
    N = w_mat.shape[1]
    return pl.pallas_call(
        _conv_relu_pool_kernel,
        out_shape=jax.ShapeDtypeStruct((B, M, N), jnp.bfloat16),
        grid=(B,),
        in_specs=[
            pl.BlockSpec((1, T, M, K), lambda b: (b, 0, 0, 0)),
            pl.BlockSpec((K, N), lambda b: (0, 0)),
            pl.BlockSpec((1, N), lambda b: (0, 0)),
        ],
        out_specs=pl.BlockSpec((1, M, N), lambda b: (b, 0, 0)),
        compiler_params=pltpu.CompilerParams(dimension_semantics=("parallel",)),
    )(patches, w_mat, bias)


def tail(patches, w2_mat, b2, wfc, bfc):
    B, T, S, K2 = patches.shape
    N = w2_mat.shape[1]
    D2 = bfc.shape[1]
    return pl.pallas_call(
        _tail_kernel,
        out_shape=jax.ShapeDtypeStruct((B, 1, D2), jnp.float32),
        grid=(B,),
        in_specs=[
            pl.BlockSpec((1, T, S, K2), lambda b: (b, 0, 0, 0)),
            pl.BlockSpec((K2, N), lambda b: (0, 0)),
            pl.BlockSpec((1, N), lambda b: (0, 0)),
            pl.BlockSpec((S, N, D2), lambda b: (0, 0, 0)),
            pl.BlockSpec((1, D2), lambda b: (0, 0)),
        ],
        out_specs=pl.BlockSpec((1, 1, D2), lambda b: (b, 0, 0)),
        compiler_params=pltpu.CompilerParams(dimension_semantics=("parallel",)),
    )(patches, w2_mat, b2, wfc, bfc)


# ---------------------------------------------------------------------------
# Glue (im2col with pool-tap ordering, layout transposes, parameter setup)
# ---------------------------------------------------------------------------
def pooled_patches(x):
    """im2col for a 3x3 valid conv followed by a 3x3/3 floor-mode max-pool.

    x : (B, H, W, C) -> patches (B, 9, P*Q, 9*C) with the 9 pool-window taps
    on axis 1, so the kernel pools by a running max over the tap matmuls.
    Patch element order along K is (kh, kw, ci), matching the weight layout.
    """
    B, H, W, C = x.shape
    P, Q = (H - 2) // 3, (W - 2) // 3          # floor-mode pool output size
    cols = [x[:, kh:kh + 3 * P, kw:kw + 3 * Q, :]
            for kh in range(3) for kw in range(3)]
    p = jnp.stack(cols, axis=3)                 # (B, 3P, 3Q, 9, C)
    p = p.reshape(B, P, 3, Q, 3, 9, C)          # (b, pi, a, pj, bb, kk, ci)
    p = p.transpose(0, 2, 4, 1, 3, 5, 6)        # (b, a, bb, pi, pj, kk, ci)
    return p.reshape(B, 9, P * Q, 9 * C), P, Q


def autocalibration13_forward(x_nchw, params):
    B = x_nchw.shape[0]
    x = jnp.transpose(x_nchw, (0, 2, 3, 1)).astype(jnp.bfloat16)  # NCHW -> NHWC

    # conv1 + ReLU + pool1 (one pallas_call)
    p1, P1, Q1 = pooled_patches(x)
    y1 = conv_relu_pool(p1, params["w1_mat"], params["b1"])   # (B, P1*Q1, 64)
    y1 = y1.reshape(B, P1, Q1, 64)

    # conv2 + ReLU + pool2 + NCHW flatten + fc1|fc2 + sigmoid/ELU (one call)
    p2, _, _ = pooled_patches(y1)
    d = params["bfc"].shape[1] // 2
    out = tail(p2, params["w2_mat"], params["b2"],
               params["wfc"], params["bfc"])                  # (B, 1, 2D)
    out = out.reshape(B, 2, d)
    return jnp.transpose(out, (1, 0, 2))                      # (2, B, D)


def init_params(key, input_shape, output_dim):
    # Deterministic synthetic init mirroring the PyTorch module's parameters.
    C, H, W = input_shape
    ks = jax.random.split(key, 8)

    def u(k, shape, fan_in):
        bound = 1.0 / jnp.sqrt(jnp.float32(fan_in))
        return jax.random.uniform(k, shape, jnp.float32, -bound, bound)

    w1 = u(ks[0], (64, C, 3, 3), C * 9)      # torch Conv2d weight (Cout,Cin,kh,kw)
    b1 = u(ks[1], (64,), C * 9)
    w2 = u(ks[2], (128, 64, 3, 3), 64 * 9)
    b2 = u(ks[3], (128,), 64 * 9)

    p1h, p1w = (H - 2) // 3, (W - 2) // 3
    p2h, p2w = (p1h - 2) // 3, (p1w - 2) // 3
    s = p2h * p2w
    cnn_dim = 128 * s                         # matches module's _cnn_output_dim

    fc1_w = u(ks[4], (output_dim, cnn_dim), cnn_dim)   # torch Linear (out, in)
    fc1_b = u(ks[5], (output_dim,), cnn_dim)
    fc2_w = u(ks[6], (output_dim, cnn_dim), cnn_dim)
    fc2_b = u(ks[7], (output_dim,), cnn_dim)

    # Fuse fc1|fc2 into one (cnn_dim, 2D) weight, then fold the torch NCHW
    # flatten (feature index k = c*S + s) into a pre-permuted (S, 128, 2D)
    # weight so the kernel needs no transpose/reshape of the conv2 output.
    w_cat = jnp.concatenate([fc1_w.T, fc2_w.T], axis=1)             # (cnn_dim, 2D)
    wfc = w_cat.reshape(128, s, 2 * output_dim).transpose(1, 0, 2)  # (S, 128, 2D)

    return {
        # (kh, kw, ci, co) flattened -> matches im2col patch element order
        "w1_mat": jnp.transpose(w1, (2, 3, 1, 0)).reshape(9 * C, 64).astype(jnp.bfloat16),
        "b1": b1.reshape(1, 64),
        "w2_mat": jnp.transpose(w2, (2, 3, 1, 0)).reshape(9 * 64, 128).astype(jnp.bfloat16),
        "b2": b2.reshape(1, 128),
        "wfc": wfc,
        "bfc": jnp.concatenate([fc1_b, fc2_b]).reshape(1, 2 * output_dim),
    }


if __name__ == "__main__":
    key = jax.random.PRNGKey(0)
    input_shape = (4, 32, 32)   # (C, H, W): smallest spatial that survives conv/pool x2
    output_dim = 8
    B = 2

    pkey, xkey = jax.random.split(key)
    params = init_params(pkey, input_shape, output_dim)
    x = jax.random.normal(xkey, (B,) + input_shape, jnp.float32)  # NCHW, like torch

    fwd = jax.jit(autocalibration13_forward)
    out = jax.block_until_ready(fwd(x, params))
    assert out.shape == (2, B, output_dim), out.shape
    assert bool(jnp.all(jnp.isfinite(out)))
    print("KERNEL_OK")
</pallas_src>

<mosaic_0001>
module attributes {stable_mosaic.version = 11 : i64} {
  func.func @_conv_relu_pool_kernel(%arg0: i32, %arg1: memref<1x9x100x36xbf16, #tpu.memory_space<vmem>>, %arg2: memref<36x64xbf16, #tpu.memory_space<vmem>>, %arg3: memref<1x64xf32, #tpu.memory_space<vmem>>, %arg4: memref<1x100x64xbf16, #tpu.memory_space<vmem>>) attributes {dimension_semantics = [#tpu.dimension_semantics<parallel>], iteration_bounds = array<i64: 2>, scalar_prefetch = 0 : i64, scratch_operands = 0 : i64, tpu.core_type = #tpu.core_type<tc>, window_params = [{transform_indices = @transform_0, window_bounds = array<i64: 1, 9, 100, 36>}, {pipeline_mode = #tpu.pipeline_mode<synchronous>, transform_indices = @transform_1, window_bounds = array<i64: 36, 64>}, {pipeline_mode = #tpu.pipeline_mode<synchronous>, transform_indices = @transform_2, window_bounds = array<i64: 1, 64>}, {transform_indices = @transform_3, window_bounds = array<i64: 1, 100, 64>}]} {
    %c0 = arith.constant 0 : index
    %c0_0 = arith.constant 0 : index
    %0 = vector.load %arg2[%c0, %c0_0] : memref<36x64xbf16, #tpu.memory_space<vmem>>, vector<36x64xbf16>
    %c0_1 = arith.constant 0 : index
    %c0_2 = arith.constant 0 : index
    %c0_3 = arith.constant 0 : index
    %c0_4 = arith.constant 0 : index
    %1 = vector.load %arg1[%c0_1, %c0_2, %c0_3, %c0_4] : memref<1x9x100x36xbf16, #tpu.memory_space<vmem>>, vector<1x1x100x36xbf16>
    %2 = vector.shape_cast %1 : vector<1x1x100x36xbf16> to vector<100x36xbf16>
    %cst = arith.constant dense<0.000000e+00> : vector<100x64xf32>
    %3 = tpu.matmul %2, %0, %cst {dimension_numbers = #tpu.dot_dimension_numbers<[1], [0], [0], [1], [0, 0, 1, 1], [], []>} : vector<100x36xbf16>, vector<36x64xbf16>, vector<100x64xf32> -> vector<100x64xf32>
    %c0_5 = arith.constant 0 : index
    %c1 = arith.constant 1 : index
    %c0_6 = arith.constant 0 : index
    %c0_7 = arith.constant 0 : index
    %4 = vector.load %arg1[%c0_5, %c1, %c0_6, %c0_7] : memref<1x9x100x36xbf16, #tpu.memory_space<vmem>>, vector<1x1x100x36xbf16>
    %5 = vector.shape_cast %4 : vector<1x1x100x36xbf16> to vector<100x36xbf16>
    %cst_8 = arith.constant dense<0.000000e+00> : vector<100x64xf32>
    %6 = tpu.matmul %5, %0, %cst_8 {dimension_numbers = #tpu.dot_dimension_numbers<[1], [0], [0], [1], [0, 0, 1, 1], [], []>} : vector<100x36xbf16>, vector<36x64xbf16>, vector<100x64xf32> -> vector<100x64xf32>
    %7 = arith.maximumf %3, %6 : vector<100x64xf32>
    %c0_9 = arith.constant 0 : index
    %c2 = arith.constant 2 : index
    %c0_10 = arith.constant 0 : index
    %c0_11 = arith.constant 0 : index
    %8 = vector.load %arg1[%c0_9, %c2, %c0_10, %c0_11] : memref<1x9x100x36xbf16, #tpu.memory_space<vmem>>, vector<1x1x100x36xbf16>
    %9 = vector.shape_cast %8 : vector<1x1x100x36xbf16> to vector<100x36xbf16>
    %cst_12 = arith.constant dense<0.000000e+00> : vector<100x64xf32>
    %10 = tpu.matmul %9, %0, %cst_12 {dimension_numbers = #tpu.dot_dimension_numbers<[1], [0], [0], [1], [0, 0, 1, 1], [], []>} : vector<100x36xbf16>, vector<36x64xbf16>, vector<100x64xf32> -> vector<100x64xf32>
    %11 = arith.maximumf %7, %10 : vector<100x64xf32>
    %c0_13 = arith.constant 0 : index
    %c3 = arith.constant 3 : index
    %c0_14 = arith.constant 0 : index
    %c0_15 = arith.constant 0 : index
    %12 = vector.load %arg1[%c0_13, %c3, %c0_14, %c0_15] : memref<1x9x100x36xbf16, #tpu.memory_space<vmem>>, vector<1x1x100x36xbf16>
    %13 = vector.shape_cast %12 : vector<1x1x100x36xbf16> to vector<100x36xbf16>
    %cst_16 = arith.constant dense<0.000000e+00> : vector<100x64xf32>
    %14 = tpu.matmul %13, %0, %cst_16 {dimension_numbers = #tpu.dot_dimension_numbers<[1], [0], [0], [1], [0, 0, 1, 1], [], []>} : vector<100x36xbf16>, vector<36x64xbf16>, vector<100x64xf32> -> vector<100x64xf32>
    %15 = arith.maximumf %11, %14 : vector<100x64xf32>
    %c0_17 = arith.constant 0 : index
    %c4 = arith.constant 4 : index
    %c0_18 = arith.constant 0 : index
    %c0_19 = arith.constant 0 : index
    %16 = vector.load %arg1[%c0_17, %c4, %c0_18, %c0_19] : memref<1x9x100x36xbf16, #tpu.memory_space<vmem>>, vector<1x1x100x36xbf16>
    %17 = vector.shape_cast %16 : vector<1x1x100x36xbf16> to vector<100x36xbf16>
    %cst_20 = arith.constant dense<0.000000e+00> : vector<100x64xf32>
    %18 = tpu.matmul %17, %0, %cst_20 {dimension_numbers = #tpu.dot_dimension_numbers<[1], [0], [0], [1], [0, 0, 1, 1], [], []>} : vector<100x36xbf16>, vector<36x64xbf16>, vector<100x64xf32> -> vector<100x64xf32>
    %19 = arith.maximumf %15, %18 : vector<100x64xf32>
    %c0_21 = arith.constant 0 : index
    %c5 = arith.constant 5 : index
    %c0_22 = arith.constant 0 : index
    %c0_23 = arith.constant 0 : index
    %20 = vector.load %arg1[%c0_21, %c5, %c0_22, %c0_23] : memref<1x9x100x36xbf16, #tpu.memory_space<vmem>>, vector<1x1x100x36xbf16>
    %21 = vector.shape_cast %20 : vector<1x1x100x36xbf16> to vector<100x36xbf16>
    %cst_24 = arith.constant dense<0.000000e+00> : vector<100x64xf32>
    %22 = tpu.matmul %21, %0, %cst_24 {dimension_numbers = #tpu.dot_dimension_numbers<[1], [0], [0], [1], [0, 0, 1, 1], [], []>} : vector<100x36xbf16>, vector<36x64xbf16>, vector<100x64xf32> -> vector<100x64xf32>
    %23 = arith.maximumf %19, %22 : vector<100x64xf32>
    %c0_25 = arith.constant 0 : index
    %c6 = arith.constant 6 : index
    %c0_26 = arith.constant 0 : index
    %c0_27 = arith.constant 0 : index
    %24 = vector.load %arg1[%c0_25, %c6, %c0_26, %c0_27] : memref<1x9x100x36xbf16, #tpu.memory_space<vmem>>, vector<1x1x100x36xbf16>
    %25 = vector.shape_cast %24 : vector<1x1x100x36xbf16> to vector<100x36xbf16>
    %cst_28 = arith.constant dense<0.000000e+00> : vector<100x64xf32>
    %26 = tpu.matmul %25, %0, %cst_28 {dimension_numbers = #tpu.dot_dimension_numbers<[1], [0], [0], [1], [0, 0, 1, 1], [], []>} : vector<100x36xbf16>, vector<36x64xbf16>, vector<100x64xf32> -> vector<100x64xf32>
    %27 = arith.maximumf %23, %26 : vector<100x64xf32>
    %c0_29 = arith.constant 0 : index
    %c7 = arith.constant 7 : index
    %c0_30 = arith.constant 0 : index
    %c0_31 = arith.constant 0 : index
    %28 = vector.load %arg1[%c0_29, %c7, %c0_30, %c0_31] : memref<1x9x100x36xbf16, #tpu.memory_space<vmem>>, vector<1x1x100x36xbf16>
    %29 = vector.shape_cast %28 : vector<1x1x100x36xbf16> to vector<100x36xbf16>
    %cst_32 = arith.constant dense<0.000000e+00> : vector<100x64xf32>
    %30 = tpu.matmul %29, %0, %cst_32 {dimension_numbers = #tpu.dot_dimension_numbers<[1], [0], [0], [1], [0, 0, 1, 1], [], []>} : vector<100x36xbf16>, vector<36x64xbf16>, vector<100x64xf32> -> vector<100x64xf32>
    %31 = arith.maximumf %27, %30 : vector<100x64xf32>
    %c0_33 = arith.constant 0 : index
    %c8 = arith.constant 8 : index
    %c0_34 = arith.constant 0 : index
    %c0_35 = arith.constant 0 : index
    %32 = vector.load %arg1[%c0_33, %c8, %c0_34, %c0_35] : memref<1x9x100x36xbf16, #tpu.memory_space<vmem>>, vector<1x1x100x36xbf16>
    %33 = vector.shape_cast %32 : vector<1x1x100x36xbf16> to vector<100x36xbf16>
    %cst_36 = arith.constant dense<0.000000e+00> : vector<100x64xf32>
    %34 = tpu.matmul %33, %0, %cst_36 {dimension_numbers = #tpu.dot_dimension_numbers<[1], [0], [0], [1], [0, 0, 1, 1], [], []>} : vector<100x36xbf16>, vector<36x64xbf16>, vector<100x64xf32> -> vector<100x64xf32>
    %35 = arith.maximumf %31, %34 : vector<100x64xf32>
    %c0_37 = arith.constant 0 : index
    %c0_38 = arith.constant 0 : index
    %36 = vector.load %arg3[%c0_37, %c0_38] : memref<1x64xf32, #tpu.memory_space<vmem>>, vector<1x64xf32>
    %37 = vector.broadcast %36 : vector<1x64xf32> to vector<100x64xf32>
    %38 = arith.addf %35, %37 : vector<100x64xf32>
    %cst_39 = arith.constant 0.000000e+00 : f32
    %39 = vector.broadcast %cst_39 : f32 to vector<100x64xf32>
    %40 = arith.maximumf %38, %39 : vector<100x64xf32>
    %41 = arith.truncf %40 : vector<100x64xf32> to vector<100x64xbf16>
    %c0_40 = arith.constant 0 : index
    %c0_41 = arith.constant 0 : index
    %c0_42 = arith.constant 0 : index
    %42 = vector.load %arg4[%c0_40, %c0_41, %c0_42] : memref<1x100x64xbf16, #tpu.memory_space<vmem>>, vector<1x100x64xbf16>
    %43 = vector.shape_cast %42 : vector<1x100x64xbf16> to vector<100x64xbf16>
    %44 = vector.shape_cast %41 : vector<100x64xbf16> to vector<1x100x64xbf16>
    tpu.vector_store %arg4[%c0_40, %c0_41, %c0_42], %44 {strides = array<i32>} : memref<1x100x64xbf16, #tpu.memory_space<vmem>>, vector<1x100x64xbf16>,
    return
  }
  func.func @transform_0(%arg0: i32) -> (i32, i32, i32, i32) {
    %c0_i32 = arith.constant 0 : i32
    %c0_i32_0 = arith.constant 0 : i32
    %c0_i32_1 = arith.constant 0 : i32
    %c0_i32_2 = arith.constant 0 : i32
    return %arg0, %c0_i32, %c0_i32_0, %c0_i32_1 : i32, i32, i32, i32
  }
  func.func @transform_1(%arg0: i32) -> (i32, i32) {
    %c0_i32 = arith.constant 0 : i32
    %c0_i32_0 = arith.constant 0 : i32
    %c0_i32_1 = arith.constant 0 : i32
    return %c0_i32, %c0_i32_0 : i32, i32
  }
  func.func @transform_2(%arg0: i32) -> (i32, i32) {
    %c0_i32 = arith.constant 0 : i32
    %c0_i32_0 = arith.constant 0 : i32
    %c0_i32_1 = arith.constant 0 : i32
    return %c0_i32, %c0_i32_0 : i32, i32
  }
  func.func @transform_3(%arg0: i32) -> (i32, i32, i32) {
    %c0_i32 = arith.constant 0 : i32
    %c0_i32_0 = arith.constant 0 : i32
    %c0_i32_1 = arith.constant 0 : i32
    return %arg0, %c0_i32, %c0_i32_0 : i32, i32, i32
  }
}

module attributes {stable_mosaic.version = 11 : i64} {
  func.func @_tail_kernel(%arg0: i32, %arg1: memref<1x9x4x576xbf16, #tpu.memory_space<vmem>>, %arg2: memref<576x128xbf16, #tpu.memory_space<vmem>>, %arg3: memref<1x128xf32, #tpu.memory_space<vmem>>, %arg4: memref<4x128x16xf32, #tpu.memory_space<vmem>>, %arg5: memref<1x16xf32, #tpu.memory_space<vmem>>, %arg6: memref<1x1x16xf32, #tpu.memory_space<vmem>>) attributes {dimension_semantics = [#tpu.dimension_semantics<parallel>], iteration_bounds = array<i64: 2>, scalar_prefetch = 0 : i64, scratch_operands = 0 : i64, tpu.core_type = #tpu.core_type<tc>, window_params = [{transform_indices = @transform_0, window_bounds = array<i64: 1, 9, 4, 576>}, {pipeline_mode = #tpu.pipeline_mode<synchronous>, transform_indices = @transform_1, window_bounds = array<i64: 576, 128>}, {pipeline_mode = #tpu.pipeline_mode<synchronous>, transform_indices = @transform_2, window_bounds = array<i64: 1, 128>}, {pipeline_mode = #tpu.pipeline_mode<synchronous>, transform_indices = @transform_3, window_bounds = array<i64: 4, 128, 16>}, {pipeline_mode = #tpu.pipeline_mode<synchronous>, transform_indices = @transform_4, window_bounds = array<i64: 1, 16>}, {transform_indices = @transform_5, window_bounds = array<i64: 1, 1, 16>}]} {
    %c0 = arith.constant 0 : index
    %c0_0 = arith.constant 0 : index
    %0 = vector.load %arg2[%c0, %c0_0] : memref<576x128xbf16, #tpu.memory_space<vmem>>, vector<576x128xbf16>
    %c0_1 = arith.constant 0 : index
    %c0_2 = arith.constant 0 : index
    %c0_3 = arith.constant 0 : index
    %c0_4 = arith.constant 0 : index
    %1 = vector.load %arg1[%c0_1, %c0_2, %c0_3, %c0_4] : memref<1x9x4x576xbf16, #tpu.memory_space<vmem>>, vector<1x1x4x576xbf16>
    %2 = vector.shape_cast %1 : vector<1x1x4x576xbf16> to vector<4x576xbf16>
    %cst = arith.constant dense<0.000000e+00> : vector<4x128xf32>
    %3 = tpu.matmul %2, %0, %cst {dimension_numbers = #tpu.dot_dimension_numbers<[1], [0], [0], [1], [0, 0, 1, 1], [], []>} : vector<4x576xbf16>, vector<576x128xbf16>, vector<4x128xf32> -> vector<4x128xf32>
    %c0_5 = arith.constant 0 : index
    %c1 = arith.constant 1 : index
    %c0_6 = arith.constant 0 : index
    %c0_7 = arith.constant 0 : index
    %4 = vector.load %arg1[%c0_5, %c1, %c0_6, %c0_7] : memref<1x9x4x576xbf16, #tpu.memory_space<vmem>>, vector<1x1x4x576xbf16>
    %5 = vector.shape_cast %4 : vector<1x1x4x576xbf16> to vector<4x576xbf16>
    %cst_8 = arith.constant dense<0.000000e+00> : vector<4x128xf32>
    %6 = tpu.matmul %5, %0, %cst_8 {dimension_numbers = #tpu.dot_dimension_numbers<[1], [0], [0], [1], [0, 0, 1, 1], [], []>} : vector<4x576xbf16>, vector<576x128xbf16>, vector<4x128xf32> -> vector<4x128xf32>
    %7 = arith.maximumf %3, %6 : vector<4x128xf32>
    %c0_9 = arith.constant 0 : index
    %c2 = arith.constant 2 : index
    %c0_10 = arith.constant 0 : index
    %c0_11 = arith.constant 0 : index
    %8 = vector.load %arg1[%c0_9, %c2, %c0_10, %c0_11] : memref<1x9x4x576xbf16, #tpu.memory_space<vmem>>, vector<1x1x4x576xbf16>
    %9 = vector.shape_cast %8 : vector<1x1x4x576xbf16> to vector<4x576xbf16>
    %cst_12 = arith.constant dense<0.000000e+00> : vector<4x128xf32>
    %10 = tpu.matmul %9, %0, %cst_12 {dimension_numbers = #tpu.dot_dimension_numbers<[1], [0], [0], [1], [0, 0, 1, 1], [], []>} : vector<4x576xbf16>, vector<576x128xbf16>, vector<4x128xf32> -> vector<4x128xf32>
    %11 = arith.maximumf %7, %10 : vector<4x128xf32>
    %c0_13 = arith.constant 0 : index
    %c3 = arith.constant 3 : index
    %c0_14 = arith.constant 0 : index
    %c0_15 = arith.constant 0 : index
    %12 = vector.load %arg1[%c0_13, %c3, %c0_14, %c0_15] : memref<1x9x4x576xbf16, #tpu.memory_space<vmem>>, vector<1x1x4x576xbf16>
    %13 = vector.shape_cast %12 : vector<1x1x4x576xbf16> to vector<4x576xbf16>
    %cst_16 = arith.constant dense<0.000000e+00> : vector<4x128xf32>
    %14 = tpu.matmul %13, %0, %cst_16 {dimension_numbers = #tpu.dot_dimension_numbers<[1], [0], [0], [1], [0, 0, 1, 1], [], []>} : vector<4x576xbf16>, vector<576x128xbf16>, vector<4x128xf32> -> vector<4x128xf32>
    %15 = arith.maximumf %11, %14 : vector<4x128xf32>
    %c0_17 = arith.constant 0 : index
    %c4 = arith.constant 4 : index
    %c0_18 = arith.constant 0 : index
    %c0_19 = arith.constant 0 : index
    %16 = vector.load %arg1[%c0_17, %c4, %c0_18, %c0_19] : memref<1x9x4x576xbf16, #tpu.memory_space<vmem>>, vector<1x1x4x576xbf16>
    %17 = vector.shape_cast %16 : vector<1x1x4x576xbf16> to vector<4x576xbf16>
    %cst_20 = arith.constant dense<0.000000e+00> : vector<4x128xf32>
    %18 = tpu.matmul %17, %0, %cst_20 {dimension_numbers = #tpu.dot_dimension_numbers<[1], [0], [0], [1], [0, 0, 1, 1], [], []>} : vector<4x576xbf16>, vector<576x128xbf16>, vector<4x128xf32> -> vector<4x128xf32>
    %19 = arith.maximumf %15, %18 : vector<4x128xf32>
    %c0_21 = arith.constant 0 : index
    %c5 = arith.constant 5 : index
    %c0_22 = arith.constant 0 : index
    %c0_23 = arith.constant 0 : index
    %20 = vector.load %arg1[%c0_21, %c5, %c0_22, %c0_23] : memref<1x9x4x576xbf16, #tpu.memory_space<vmem>>, vector<1x1x4x576xbf16>
    %21 = vector.shape_cast %20 : vector<1x1x4x576xbf16> to vector<4x576xbf16>
    %cst_24 = arith.constant dense<0.000000e+00> : vector<4x128xf32>
    %22 = tpu.matmul %21, %0, %cst_24 {dimension_numbers = #tpu.dot_dimension_numbers<[1], [0], [0], [1], [0, 0, 1, 1], [], []>} : vector<4x576xbf16>, vector<576x128xbf16>, vector<4x128xf32> -> vector<4x128xf32>
    %23 = arith.maximumf %19, %22 : vector<4x128xf32>
    %c0_25 = arith.constant 0 : index
    %c6 = arith.constant 6 : index
    %c0_26 = arith.constant 0 : index
    %c0_27 = arith.constant 0 : index
    %24 = vector.load %arg1[%c0_25, %c6, %c0_26, %c0_27] : memref<1x9x4x576xbf16, #tpu.memory_space<vmem>>, vector<1x1x4x576xbf16>
    %25 = vector.shape_cast %24 : vector<1x1x4x576xbf16> to vector<4x576xbf16>
    %cst_28 = arith.constant dense<0.000000e+00> : vector<4x128xf32>
    %26 = tpu.matmul %25, %0, %cst_28 {dimension_numbers = #tpu.dot_dimension_numbers<[1], [0], [0], [1], [0, 0, 1, 1], [], []>} : vector<4x576xbf16>, vector<576x128xbf16>, vector<4x128xf32> -> vector<4x128xf32>
    %27 = arith.maximumf %23, %26 : vector<4x128xf32>
    %c0_29 = arith.constant 0 : index
    %c7 = arith.constant 7 : index
    %c0_30 = arith.constant 0 : index
    %c0_31 = arith.constant 0 : index
    %28 = vector.load %arg1[%c0_29, %c7, %c0_30, %c0_31] : memref<1x9x4x576xbf16, #tpu.memory_space<vmem>>, vector<1x1x4x576xbf16>
    %29 = vector.shape_cast %28 : vector<1x1x4x576xbf16> to vector<4x576xbf16>
    %cst_32 = arith.constant dense<0.000000e+00> : vector<4x128xf32>
    %30 = tpu.matmul %29, %0, %cst_32 {dimension_numbers = #tpu.dot_dimension_numbers<[1], [0], [0], [1], [0, 0, 1, 1], [], []>} : vector<4x576xbf16>, vector<576x128xbf16>, vector<4x128xf32> -> vector<4x128xf32>
    %31 = arith.maximumf %27, %30 : vector<4x128xf32>
    %c0_33 = arith.constant 0 : index
    %c8 = arith.constant 8 : index
    %c0_34 = arith.constant 0 : index
    %c0_35 = arith.constant 0 : index
    %32 = vector.load %arg1[%c0_33, %c8, %c0_34, %c0_35] : memref<1x9x4x576xbf16, #tpu.memory_space<vmem>>, vector<1x1x4x576xbf16>
    %33 = vector.shape_cast %32 : vector<1x1x4x576xbf16> to vector<4x576xbf16>
    %cst_36 = arith.constant dense<0.000000e+00> : vector<4x128xf32>
    %34 = tpu.matmul %33, %0, %cst_36 {dimension_numbers = #tpu.dot_dimension_numbers<[1], [0], [0], [1], [0, 0, 1, 1], [], []>} : vector<4x576xbf16>, vector<576x128xbf16>, vector<4x128xf32> -> vector<4x128xf32>
    %35 = arith.maximumf %31, %34 : vector<4x128xf32>
    %c0_37 = arith.constant 0 : index
    %c0_38 = arith.constant 0 : index
    %36 = vector.load %arg3[%c0_37, %c0_38] : memref<1x128xf32, #tpu.memory_space<vmem>>, vector<1x128xf32>
    %37 = vector.broadcast %36 : vector<1x128xf32> to vector<4x128xf32>
    %38 = arith.addf %35, %37 : vector<4x128xf32>
    %cst_39 = arith.constant 0.000000e+00 : f32
    %39 = vector.broadcast %cst_39 : f32 to vector<4x128xf32>
    %40 = arith.maximumf %38, %39 : vector<4x128xf32>
    %41 = vector.extract_strided_slice %40 {offsets = [0, 0], sizes = [1, 128], strides = [1, 1]} : vector<4x128xf32> to vector<1x128xf32>
    %c0_40 = arith.constant 0 : index
    %c0_41 = arith.constant 0 : index
    %c0_42 = arith.constant 0 : index
    %42 = vector.load %arg4[%c0_40, %c0_41, %c0_42] : memref<4x128x16xf32, #tpu.memory_space<vmem>>, vector<1x128x16xf32>
    %43 = vector.shape_cast %42 : vector<1x128x16xf32> to vector<128x16xf32>
    %cst_43 = arith.constant dense<0.000000e+00> : vector<1x16xf32>
    %44 = tpu.matmul %41, %43, %cst_43 {dimension_numbers = #tpu.dot_dimension_numbers<[1], [0], [0], [1], [0, 0, 1, 1], [], []>} : vector<1x128xf32>, vector<128x16xf32>, vector<1x16xf32> -> vector<1x16xf32>
    %45 = vector.extract_strided_slice %40 {offsets = [1, 0], sizes = [1, 128], strides = [1, 1]} : vector<4x128xf32> to vector<1x128xf32>
    %c1_44 = arith.constant 1 : index
    %c0_45 = arith.constant 0 : index
    %c0_46 = arith.constant 0 : index
    %46 = vector.load %arg4[%c1_44, %c0_45, %c0_46] : memref<4x128x16xf32, #tpu.memory_space<vmem>>, vector<1x128x16xf32>
    %47 = vector.shape_cast %46 : vector<1x128x16xf32> to vector<128x16xf32>
    %cst_47 = arith.constant dense<0.000000e+00> : vector<1x16xf32>
    %48 = tpu.matmul %45, %47, %cst_47 {dimension_numbers = #tpu.dot_dimension_numbers<[1], [0], [0], [1], [0, 0, 1, 1], [], []>} : vector<1x128xf32>, vector<128x16xf32>, vector<1x16xf32> -> vector<1x16xf32>
    %49 = arith.addf %44, %48 : vector<1x16xf32>
    %50 = vector.extract_strided_slice %40 {offsets = [2, 0], sizes = [1, 128], strides = [1, 1]} : vector<4x128xf32> to vector<1x128xf32>
    %c2_48 = arith.constant 2 : index
    %c0_49 = arith.constant 0 : index
    %c0_50 = arith.constant 0 : index
    %51 = vector.load %arg4[%c2_48, %c0_49, %c0_50] : memref<4x128x16xf32, #tpu.memory_space<vmem>>, vector<1x128x16xf32>
    %52 = vector.shape_cast %51 : vector<1x128x16xf32> to vector<128x16xf32>
    %cst_51 = arith.constant dense<0.000000e+00> : vector<1x16xf32>
    %53 = tpu.matmul %50, %52, %cst_51 {dimension_numbers = #tpu.dot_dimension_numbers<[1], [0], [0], [1], [0, 0, 1, 1], [], []>} : vector<1x128xf32>, vector<128x16xf32>, vector<1x16xf32> -> vector<1x16xf32>
    %54 = arith.addf %49, %53 : vector<1x16xf32>
    %55 = vector.extract_strided_slice %40 {offsets = [3, 0], sizes = [1, 128], strides = [1, 1]} : vector<4x128xf32> to vector<1x128xf32>
    %c3_52 = arith.constant 3 : index
    %c0_53 = arith.constant 0 : index
    %c0_54 = arith.constant 0 : index
    %56 = vector.load %arg4[%c3_52, %c0_53, %c0_54] : memref<4x128x16xf32, #tpu.memory_space<vmem>>, vector<1x128x16xf32>
    %57 = vector.shape_cast %56 : vector<1x128x16xf32> to vector<128x16xf32>
    %cst_55 = arith.constant dense<0.000000e+00> : vector<1x16xf32>
    %58 = tpu.matmul %55, %57, %cst_55 {dimension_numbers = #tpu.dot_dimension_numbers<[1], [0], [0], [1], [0, 0, 1, 1], [], []>} : vector<1x128xf32>, vector<128x16xf32>, vector<1x16xf32> -> vector<1x16xf32>
    %59 = arith.addf %54, %58 : vector<1x16xf32>
    %c0_56 = arith.constant 0 : index
    %c0_57 = arith.constant 0 : index
    %60 = vector.load %arg5[%c0_56, %c0_57] : memref<1x16xf32, #tpu.memory_space<vmem>>, vector<1x16xf32>
    %61 = arith.addf %59, %60 : vector<1x16xf32>
    %62 = tpu.iota {dimensions = array<i32: 1>} : vector<1x16xi32>
    %cst_58 = arith.constant 0.000000e+00 : f32
    %63 = vector.broadcast %cst_58 : f32 to vector<1x16xf32>
    %64 = arith.subf %63, %61 : vector<1x16xf32>
    %65 = math.exp %64 : vector<1x16xf32>
    %cst_59 = arith.constant 1.000000e+00 : f32
    %66 = vector.broadcast %cst_59 : f32 to vector<1x16xf32>
    %67 = arith.addf %66, %65 : vector<1x16xf32>
    %cst_60 = arith.constant 1.000000e+00 : f32
    %68 = vector.broadcast %cst_60 : f32 to vector<1x16xf32>
    %69 = arith.divf %68, %67 : vector<1x16xf32>
    %cst_61 = arith.constant 0.000000e+00 : f32
    %70 = vector.broadcast %cst_61 : f32 to vector<1x16xf32>
    %71 = arith.cmpf ogt, %61, %70 : vector<1x16xf32>
    %cst_62 = arith.constant 0.000000e+00 : f32
    %72 = vector.broadcast %cst_62 : f32 to vector<1x16xf32>
    %73 = arith.minimumf %61, %72 : vector<1x16xf32>
    %74 = math.exp %73 : vector<1x16xf32>
    %cst_63 = arith.constant 1.000000e+00 : f32
    %75 = vector.broadcast %cst_63 : f32 to vector<1x16xf32>
    %76 = arith.subf %74, %75 : vector<1x16xf32>
    %cst_64 = arith.constant 1.000000e+01 : f32
    %77 = vector.broadcast %cst_64 : f32 to vector<1x16xf32>
    %78 = arith.mulf %77, %76 : vector<1x16xf32>
    %79 = arith.select %71, %61, %78 : vector<1x16xi1>, vector<1x16xf32>
    %c8_i32 = arith.constant 8 : i32
    %80 = vector.broadcast %c8_i32 : i32 to vector<1x16xi32>
    %81 = arith.cmpi slt, %62, %80 : vector<1x16xi32>
    %82 = arith.select %81, %69, %79 : vector<1x16xi1>, vector<1x16xf32>
    %c0_65 = arith.constant 0 : index
    %c0_66 = arith.constant 0 : index
    %c0_67 = arith.constant 0 : index
    %83 = vector.load %arg6[%c0_65, %c0_66, %c0_67] : memref<1x1x16xf32, #tpu.memory_space<vmem>>, vector<1x1x16xf32>
    %84 = vector.shape_cast %83 : vector<1x1x16xf32> to vector<1x16xf32>
    %85 = vector.shape_cast %82 : vector<1x16xf32> to vector<1x1x16xf32>
    tpu.vector_store %arg6[%c0_65, %c0_66, %c0_67], %85 {strides = array<i32>} : memref<1x1x16xf32, #tpu.memory_space<vmem>>, vector<1x1x16xf32>,
    return
  }
  func.func @transform_0(%arg0: i32) -> (i32, i32, i32, i32) {
    %c0_i32 = arith.constant 0 : i32
    %c0_i32_0 = arith.constant 0 : i32
    %c0_i32_1 = arith.constant 0 : i32
    %c0_i32_2 = arith.constant 0 : i32
    return %arg0, %c0_i32, %c0_i32_0, %c0_i32_1 : i32, i32, i32, i32
  }
  func.func @transform_1(%arg0: i32) -> (i32, i32) {
    %c0_i32 = arith.constant 0 : i32
    %c0_i32_0 = arith.constant 0 : i32
    %c0_i32_1 = arith.constant 0 : i32
    return %c0_i32, %c0_i32_0 : i32, i32
  }
  func.func @transform_2(%arg0: i32) -> (i32, i32) {
    %c0_i32 = arith.constant 0 : i32
    %c0_i32_0 = arith.constant 0 : i32
    %c0_i32_1 = arith.constant 0 : i32
    return %c0_i32, %c0_i32_0 : i32, i32
  }
  func.func @transform_3(%arg0: i32) -> (i32, i32, i32) {
    %c0_i32 = arith.constant 0 : i32
    %c0_i32_0 = arith.constant 0 : i32
    %c0_i32_1 = arith.constant 0 : i32
    %c0_i32_2 = arith.constant 0 : i32
    return %c0_i32, %c0_i32_0, %c0_i32_1 : i32, i32, i32
  }
  func.func @transform_4(%arg0: i32) -> (i32, i32) {
    %c0_i32 = arith.constant 0 : i32
    %c0_i32_0 = arith.constant 0 : i32
    %c0_i32_1 = arith.constant 0 : i32
    return %c0_i32, %c0_i32_0 : i32, i32
  }
  func.func @transform_5(%arg0: i32) -> (i32, i32, i32) {
    %c0_i32 = arith.constant 0 : i32
    %c0_i32_0 = arith.constant 0 : i32
    %c0_i32_1 = arith.constant 0 : i32
    return %arg0, %c0_i32, %c0_i32_0 : i32, i32, i32
  }
}

</mosaic_0001>

<llo_original>
// kernel: autocalibration13_forward.2
$region0: #{autocalibration13_forward.2}
  #allocation0 [shape = 'u32[]', space=smem, size = 0x4, offset = 0x4, fixed_abs, tag = 'smem constant byte address 0x4 - core index']
  #allocation1 [shape = 'u32[72,128]{1,0:T(1,128)}', space=vmem, size = 0x9000, scoped, tag = 'internal scratch']
  %s0 = inlined_call_operand.vmem [shape: bf16[2,9,100,36], index: 0, kind: input, shape index: {}]
  %s1 = inlined_call_operand.vmem [shape: bf16[36,64], index: 1, kind: input, shape index: {}]
  %s2 = inlined_call_operand.vmem [shape: f32[1,64], index: 2, kind: input, shape index: {}]
  %s3 = inlined_call_operand.vmem [shape: bf16[2,100,64], index: 3, kind: output, shape index: {}]
  %s4 = sld [smem:[#allocation0]]
  $region45: #{autocalibration13_forward.2} parent=0
    _
  %s6 = ssub.s32 1, %s4
  %s7 = scalar_select 0, %s6, %s4
  loop: start=0, step=1, limit=4
  $region2: #{autocalibration13_forward.2} parent=0 // loop_pre_header
    _
  $region3: #{autocalibration13_forward.2} parent=0 // loop_header
    %s9 = sphi 0, %s13
    %p10 = scmp.ge.s32.totalorder %s9, 4
    %s19 = sphi 0, %s21
    %s22 = sphi 0, %s19
    %s23 = sphi 0, %s22
    %s39 = sphi 0, %s23
    %s43 = sphi 0, %s43
    %s45 = sphi 0, %s43
    %s46 = sphi 0, %s45
    %s60 = sphi 0, %s46
    %s64 = sphi 0, %s64
    %s66 = sphi 0, %s64
    %s67 = sphi 0, %s66
    %s81 = sphi 0, %s67
    %s87 = sphi 0, %s89
    %s90 = sphi 0, %s87
    %s91 = sphi 0, %s90
    %s107 = sphi 0, %s91
  $region4: #{autocalibration13_forward.2} parent=0 // loop_header_branch
    %12 = sbr.rel (%p10) target = $region8
  $region5: #{autocalibration13_forward.2} parent=0 // loop_body
    %s14 = ssub.s32 %s9, 1
    %s15 = ssub.s32 %s9, 2
    %s16 = sadd.s32 %s9, 1
    %s17 = ssub.s32 %s9, %s16
    %p18 = scmp.eq.s32.totalorder %s17, 0
    %s20 = sadd.s32 %s19, 1
    %s21 = scalar_select %p18, %s19, %s20
    %p24 = pneg %p18
    %p25 = scmp.eq.s32.totalorder %s9, 1
    %p26 = por %p24, %p25
    %p27 = scmp.ne.s32.totalorder %s19, %s22
    %p28 = scmp.eq.s32.totalorder %s9, 0
    %p29 = por %p27, %p28
    %p30 = scmp.ne.s32.totalorder %s19, %s22
    %p31 = scmp.eq.s32.totalorder %s14, 1
    %p32 = por %p30, %p31
    %p33 = scmp.ne.s32.totalorder %s22, %s23
    %p34 = scmp.eq.s32.totalorder %s14, 0
    %p35 = por %p33, %p34
    %p36 = scmp.ne.s32.totalorder %s22, %s23
    %p37 = scmp.eq.s32.totalorder %s15, 1
    %p38 = por %p36, %p37
    %p40 = scmp.ne.s32.totalorder %s23, %s39
    %p41 = scmp.eq.s32.totalorder %s15, 0
    %p42 = por %p40, %p41
    %s44 = sadd.s32 %s43, 1
    %p47 = scmp.eq.s32.totalorder %s9, 1
    %p48 = scmp.ne.s32.totalorder %s43, %s45
    %p49 = scmp.eq.s32.totalorder %s9, 0
    %p50 = por %p48, %p49
    %p51 = scmp.ne.s32.totalorder %s43, %s45
    %p52 = scmp.eq.s32.totalorder %s14, 1
    %p53 = por %p51, %p52
    %p54 = scmp.ne.s32.totalorder %s45, %s46
    %p55 = scmp.eq.s32.totalorder %s14, 0
    %p56 = por %p54, %p55
    %p57 = scmp.ne.s32.totalorder %s45, %s46
    %p58 = scmp.eq.s32.totalorder %s15, 1
    %p59 = por %p57, %p58
    %p61 = scmp.ne.s32.totalorder %s46, %s60
    %p62 = scmp.eq.s32.totalorder %s15, 0
    %p63 = por %p61, %p62
    %s65 = sadd.s32 %s64, 1
    %p68 = scmp.eq.s32.totalorder %s9, 1
    %p69 = scmp.ne.s32.totalorder %s64, %s66
    %p70 = scmp.eq.s32.totalorder %s9, 0
    %p71 = por %p69, %p70
    %p72 = scmp.ne.s32.totalorder %s64, %s66
    %p73 = scmp.eq.s32.totalorder %s14, 1
    %p74 = por %p72, %p73
    %p75 = scmp.ne.s32.totalorder %s66, %s67
    %p76 = scmp.eq.s32.totalorder %s14, 0
    %p77 = por %p75, %p76
    %p78 = scmp.ne.s32.totalorder %s66, %s67
    %p79 = scmp.eq.s32.totalorder %s15, 1
    %p80 = por %p78, %p79
    %p82 = scmp.ne.s32.totalorder %s67, %s81
    %p83 = scmp.eq.s32.totalorder %s15, 0
    %p84 = por %p82, %p83
    %s85 = ssub.s32 %s9, %s16
    %p86 = scmp.eq.s32.totalorder %s85, 0
    %s88 = sadd.s32 %s87, 1
    %s89 = scalar_select %p86, %s87, %s88
    %p92 = pneg %p86
    %p93 = scmp.eq.s32.totalorder %s9, 1
    %p94 = por %p92, %p93
    %p95 = scmp.ne.s32.totalorder %s87, %s90
    %p96 = scmp.eq.s32.totalorder %s9, 0
    %p97 = por %p95, %p96
    %p98 = scmp.ne.s32.totalorder %s87, %s90
    %p99 = scmp.eq.s32.totalorder %s14, 1
    %p100 = por %p98, %p99
    %p101 = scmp.ne.s32.totalorder %s90, %s91
    %p102 = scmp.eq.s32.totalorder %s14, 0
    %p103 = por %p101, %p102
    %p104 = scmp.ne.s32.totalorder %s90, %s91
    %p105 = scmp.eq.s32.totalorder %s15, 1
    %p106 = por %p104, %p105
    %p108 = scmp.ne.s32.totalorder %s91, %s107
    %p109 = scmp.eq.s32.totalorder %s15, 0
    %p110 = por %p108, %p109
    %p111 = scmp.le.s32.totalorder 1, %s9
    %p112 = scmp.lt.s32.totalorder %s9, 3
    %p113 = pnand %p111, %p112
    %p114 = pneg %p113
    // Predicated region
    $region9: #{autocalibration13_forward.2} parent=5 // pred_check
      _
    $region10: #{autocalibration13_forward.2} parent=5 // pred_check_branch
      %116 = sbr.rel (%p113) target = $region12
    $region11: #{autocalibration13_forward.2} parent=5 // pred_region
      %s117 = ssub.s32 %s9, 1
      // Predicated region
      $region13: #{autocalibration13_forward.2} parent=11 // pred_check
        %p118 = pneg %p56
      $region14: #{autocalibration13_forward.2} parent=11 // pred_check_branch
        %120 = sbr.rel (%p118) target = $region16
      $region15: #{autocalibration13_forward.2} parent=11 // pred_region
        _
      $region16: #{autocalibration13_forward.2} parent=11 // pred_fallthru
        _
      // Predicated region
      $region17: #{autocalibration13_forward.2} parent=11 // pred_check
        %p121 = pneg %p77
      $region18: #{autocalibration13_forward.2} parent=11 // pred_check_branch
        %123 = sbr.rel (%p121) target = $region20
      $region19: #{autocalibration13_forward.2} parent=11 // pred_region
        _
      $region20: #{autocalibration13_forward.2} parent=11 // pred_fallthru
        _
    $region12: #{autocalibration13_forward.2} parent=5 // pred_fallthru
      _
    %p124 = scmp.lt.s32.totalorder %s9, 2
    // Predicated region
    $region21: #{autocalibration13_forward.2} parent=5 // pred_check
      %p125 = pneg %p124
    $region22: #{autocalibration13_forward.2} parent=5 // pred_check_branch
      %127 = sbr.rel (%p125) target = $region24
    $region23: #{autocalibration13_forward.2} parent=5 // pred_region
      // Predicated region
      $region25: #{autocalibration13_forward.2} parent=23 // pred_check
        %p128 = pneg %p29
      $region26: #{autocalibration13_forward.2} parent=23 // pred_check_branch
        %130 = sbr.rel (%p128) target = $region28
      $region27: #{autocalibration13_forward.2} parent=23 // pred_region
        %p131 = scmp.lt.s32.totalorder %s9, 1
        %s132 = scalar_select %p131, %s9, 1
        %s133 = smul.addr %s132, 117
        %s134 = smul.addr %s133, 4
        %s135 = scalar_lea.vmem %s0, %s134
      $region28: #{autocalibration13_forward.2} parent=23 // pred_fallthru
        _
    $region24: #{autocalibration13_forward.2} parent=5 // pred_fallthru
      _
    %p136 = scmp.le.s32.totalorder 1, %s9
    %p137 = scmp.lt.s32.totalorder %s9, 3
    %p138 = pnand %p136, %p137
    %p139 = pneg %p138
    // Predicated region
    $region29: #{autocalibration13_forward.2} parent=5 // pred_check
      _
    $region30: #{autocalibration13_forward.2} parent=5 // pred_check_branch
      %141 = sbr.rel (%p138) target = $region32
    $region31: #{autocalibration13_forward.2} parent=5 // pred_region
      %s142 = ssub.s32 %s9, 1
      %p143 = scmp.lt.s32.totalorder %s14, 1
      %s144 = scalar_select %p143, %s14, 1
      %s145 = smul.addr %s144, 117
      %s146 = smul.addr %s145, 4
      %s147 = scalar_lea.vmem %s0, %s146
      %p148 = pneg %p35
      %p149 = pneg %p32
      %p150 = pneg %p56
      %p151 = pneg %p53
      %p152 = pneg %p77
      %p153 = pneg %p74
      %p154 = pneg %p103
      %p155 = pneg %p100
      %p156 = scmp.lt.s32.totalorder %s14, 1
      %s157 = scalar_select %p156, %s14, 1
      %s158 = smul.addr %s157, 13
      %s159 = smul.addr %s158, 4
      %s160 = scalar_lea.vmem %s3, %s159
      %p161 = scmp.lt.s32.totalorder %s14, 1
      %s162 = scalar_select %p161, %s14, 1
      %s163 = smul.addr %s162, 117
      %s164 = smul.addr %s163, 4
      %s165 = scalar_lea.vmem %s0, %s164
      %p166 = scmp.lt.s32.totalorder %s14, 1
      %s167 = scalar_select %p166, %s14, 1
      %s168 = smul.addr %s167, 13
      %s169 = smul.addr %s168, 4
      %s170 = scalar_lea.vmem %s3, %s169
      %v172 = vld [vmem:[%s1] sm:$0xf]
      %v173 = vld [vmem:[%s1 + $0x4] sm:$0xf]
      %v174 = vld [vmem:[%s1 + $0x8] sm:$0xf]
      %v175 = vld [vmem:[%s1 + $0xc] sm:$0xf]
      %v176 = vld [vmem:[%s1 + $0x10] sm:$0x3]
      %v177 = vld [vmem:[%s165] sm:$0xf]
      %v178 = vld [vmem:[%s165 + $0x4] sm:$0xf]
      %v179 = vld [vmem:[%s165 + $0x8] sm:$0xf]
      %v180 = vld [vmem:[%s165 + $0xc] sm:$0xf]
      %v181 = vld [vmem:[%s165 + $0x10] sm:$0xf]
      %v182 = vld [vmem:[%s165 + $0x14] sm:$0xf]
      %v183 = vld [vmem:[%s165 + $0x18] sm:$0xf]
      %v184 = vld [vmem:[%s165 + $0x1c] sm:$0xf]
      %v185 = vld [vmem:[%s165 + $0x20] sm:$0xf]
      %v186 = vld [vmem:[%s165 + $0x24] sm:$0xf]
      %v187 = vld [vmem:[%s165 + $0x28] sm:$0xf]
      %v188 = vld [vmem:[%s165 + $0x2c] sm:$0xf]
      %v189 = vld [vmem:[%s165 + $0x30] sm:$0x3]
      %v203 = vunpack.c.l.b16 %v177
      %v204 = vunpack.c.l.b16 %v178
      %v205 = vunpack.c.l.b16 %v179
      %v206 = vunpack.c.l.b16 %v180
      %v207 = vunpack.c.l.b16 %v181
      %v208 = vunpack.c.l.b16 %v182
      %v209 = vunpack.c.l.b16 %v183
      %v210 = vunpack.c.l.b16 %v184
      %v211 = vunpack.c.l.b16 %v185
      %v212 = vunpack.c.l.b16 %v186
      %v213 = vunpack.c.l.b16 %v187
      %v214 = vunpack.c.l.b16 %v188
      %v215 = vunpack.c.l.b16 %v189
      %v216 = vpack.c.b16 %v204, %v203
      %v217 = vpack.c.b16 %v206, %v205
      %v218 = vpack.c.b16 %v208, %v207
      %v219 = vpack.c.b16 %v210, %v209
      %v220 = vpack.c.b16 %v212, %v211
      %v221 = vpack.c.b16 %v214, %v213
      %v222 = vpack.c.b16 %v215, %v215
      %v228 = vunpack.c.l.b16 %v172
      %v229 = vunpack.c.l.b16 %v173
      %v230 = vunpack.c.l.b16 %v174
      %v231 = vunpack.c.l.b16 %v175
      %v232 = vunpack.c.l.b16 %v176
      %v233 = vpack.c.b16 %v229, %v228
      %v234 = vpack.c.b16 %v231, %v230
      %v235 = vpack.c.b16 %v232, %v232
      %vm238 = vcmask 293888
      %v240 = vsel %vm238, %v216, 0
      %v243 = vsel %vm238, %v217, 0
      %v246 = vsel %vm238, %v218, 0
      %v249 = vsel %vm238, %v219, 0
      %v252 = vsel %vm238, %v220, 0
      %v255 = vsel %vm238, %v221, 0
      %v258 = vsel %vm238, %v222, 0
      %vm260 = vcmask 1041408
      %v262 = vsel %vm260, %v235, 0
      %264 = vmatpush.bf16.msra.mxu0 0
      %265 = vmatpush.bf16.msra.mxu0 0
      %266 = vmatpush.bf16.msra.mxu0 0
      %267 = vmatpush.bf16.msra.mxu0 0
      %268 = vmatpush.bf16.msra.mxu0 0
      %269 = vmatpush.bf16.msra.mxu0 %v262
      %270 = vmatpush.bf16.msra.mxu0 %v234
      %271 = vmatpush.bf16.msra.mxu0 %v233
      %272 = vmatmul.bf16.gmra.mxu0 %v240
      %v273 = vpop.f32.mrf.mxu0
      %v274 = vadd.f32 0.0, %v273
      %v275 = vpop.f32.mrf.mxu0
      %v276 = vadd.f32 0.0, %v275
      %277 = vmatmul.bf16.gmra.mxu0 %v243
      %v278 = vpop.f32.mrf.mxu0
      %v279 = vadd.f32 0.0, %v278
      %v280 = vpop.f32.mrf.mxu0
      %v281 = vadd.f32 0.0, %v280
      %282 = vmatmul.bf16.gmra.mxu0 %v246
      %v283 = vpop.f32.mrf.mxu0
      %v284 = vadd.f32 0.0, %v283
      %v285 = vpop.f32.mrf.mxu0
      %v286 = vadd.f32 0.0, %v285
      %287 = vmatmul.bf16.gmra.mxu0 %v249
      %v288 = vpop.f32.mrf.mxu0
      %v289 = vadd.f32 0.0, %v288
      %v290 = vpop.f32.mrf.mxu0
      %v291 = vadd.f32 0.0, %v290
      %292 = vmatmul.bf16.gmra.mxu0 %v252
      %v293 = vpop.f32.mrf.mxu0
      %v294 = vadd.f32 0.0, %v293
      %v295 = vpop.f32.mrf.mxu0
      %v296 = vadd.f32 0.0, %v295
      %297 = vmatmul.bf16.gmra.mxu0 %v255
      %v298 = vpop.f32.mrf.mxu0
      %v299 = vadd.f32 0.0, %v298
      %v300 = vpop.f32.mrf.mxu0
      %v301 = vadd.f32 0.0, %v300
      %302 = vmatmul.bf16.gmra.mxu0 %v258
      %v303 = vpop.f32.mrf.mxu0
      %v304 = vadd.f32 0.0, %v303
      %v305 = vpop.f32.mrf.mxu0
      %306 = vdwg.mxu0
      %s307 = scalar_lea.vmem %s165, 52
      %v308 = vld [vmem:[%s307] sm:$0xf]
      %v309 = vld [vmem:[%s307 + $0x4] sm:$0xf]
      %v310 = vld [vmem:[%s307 + $0x8] sm:$0xf]
      %v311 = vld [vmem:[%s307 + $0xc] sm:$0xf]
      %v312 = vld [vmem:[%s307 + $0x10] sm:$0xf]
      %v313 = vld [vmem:[%s307 + $0x14] sm:$0xf]
      %v314 = vld [vmem:[%s307 + $0x18] sm:$0xf]
      %v315 = vld [vmem:[%s307 + $0x1c] sm:$0xf]
      %v316 = vld [vmem:[%s307 + $0x20] sm:$0xf]
      %v317 = vld [vmem:[%s307 + $0x24] sm:$0xf]
      %v318 = vld [vmem:[%s307 + $0x28] sm:$0xf]
      %v319 = vld [vmem:[%s307 + $0x2c] sm:$0xf]
      %v320 = vld [vmem:[%s307 + $0x30] sm:$0x3]
      %v334 = vunpack.c.l.b16 %v308
      %v335 = vunpack.c.l.b16 %v309
      %v336 = vunpack.c.l.b16 %v310
      %v337 = vunpack.c.l.b16 %v311
      %v338 = vunpack.c.l.b16 %v312
      %v339 = vunpack.c.l.b16 %v313
      %v340 = vunpack.c.l.b16 %v314
      %v341 = vunpack.c.l.b16 %v315
      %v342 = vunpack.c.l.b16 %v316
      %v343 = vunpack.c.l.b16 %v317
      %v344 = vunpack.c.l.b16 %v318
      %v345 = vunpack.c.l.b16 %v319
      %v346 = vunpack.c.l.b16 %v320
      %v347 = vpack.c.b16 %v335, %v334
      %v348 = vpack.c.b16 %v337, %v336
      %v349 = vpack.c.b16 %v339, %v338
      %v350 = vpack.c.b16 %v341, %v340
      %v351 = vpack.c.b16 %v343, %v342
      %v352 = vpack.c.b16 %v345, %v344
      %v353 = vpack.c.b16 %v346, %v346
      %v355 = vsel %vm238, %v347, 0
      %v358 = vsel %vm238, %v348, 0
      %v361 = vsel %vm238, %v349, 0
      %v364 = vsel %vm238, %v350, 0
      %v367 = vsel %vm238, %v351, 0
      %v370 = vsel %vm238, %v352, 0
      %v373 = vsel %vm238, %v353, 0
      %375 = vmatpush.bf16.msra.mxu0 0
      %376 = vmatpush.bf16.msra.mxu0 0
      %377 = vmatpush.bf16.msra.mxu0 0
      %378 = vmatpush.bf16.msra.mxu0 0
      %379 = vmatpush.bf16.msra.mxu0 0
      %380 = vmatpush.bf16.msra.mxu0 %v262
      %381 = vmatpush.bf16.msra.mxu0 %v234
      %382 = vmatpush.bf16.msra.mxu0 %v233
      %383 = vmatmul.bf16.gmra.mxu0 %v355
      %v384 = vpop.f32.mrf.mxu0
      %v385 = vadd.f32 0.0, %v384
      %v386 = vpop.f32.mrf.mxu0
      %v387 = vadd.f32 0.0, %v386
      %388 = vmatmul.bf16.gmra.mxu0 %v358
      %v389 = vpop.f32.mrf.mxu0
      %v390 = vadd.f32 0.0, %v389
      %v391 = vpop.f32.mrf.mxu0
      %v392 = vadd.f32 0.0, %v391
      %393 = vmatmul.bf16.gmra.mxu0 %v361
      %v394 = vpop.f32.mrf.mxu0
      %v395 = vadd.f32 0.0, %v394
      %v396 = vpop.f32.mrf.mxu0
      %v397 = vadd.f32 0.0, %v396
      %398 = vmatmul.bf16.gmra.mxu0 %v364
      %v399 = vpop.f32.mrf.mxu0
      %v400 = vadd.f32 0.0, %v399
      %v401 = vpop.f32.mrf.mxu0
      %v402 = vadd.f32 0.0, %v401
      %403 = vmatmul.bf16.gmra.mxu0 %v367
      %v404 = vpop.f32.mrf.mxu0
      %v405 = vadd.f32 0.0, %v404
      %v406 = vpop.f32.mrf.mxu0
      %v407 = vadd.f32 0.0, %v406
      %408 = vmatmul.bf16.gmra.mxu0 %v370
      %v409 = vpop.f32.mrf.mxu0
      %v410 = vadd.f32 0.0, %v409
      %v411 = vpop.f32.mrf.mxu0
      %v412 = vadd.f32 0.0, %v411
      %413 = vmatmul.bf16.gmra.mxu0 %v373
      %v414 = vpop.f32.mrf.mxu0
      %v415 = vadd.f32 0.0, %v414
      %v416 = vpop.f32.mrf.mxu0
      %417 = vdwg.mxu0
      %v418 = vmax.f32 %v274, %v385
      %v419 = vmax.f32 %v276, %v387
      %v420 = vmax.f32 %v279, %v390
      %v421 = vmax.f32 %v281, %v392
      %v422 = vmax.f32 %v284, %v395
      %v423 = vmax.f32 %v286, %v397
      %v424 = vmax.f32 %v289, %v400
      %v425 = vmax.f32 %v291, %v402
      %v426 = vmax.f32 %v294, %v405
      %v427 = vmax.f32 %v296, %v407
      %v428 = vmax.f32 %v299, %v410
      %v429 = vmax.f32 %v301, %v412
      %v430 = vmax.f32 %v304, %v415
      %s431 = scalar_lea.vmem %s165, 104
      %v432 = vld [vmem:[%s431] sm:$0xf]
      %v433 = vld [vmem:[%s431 + $0x4] sm:$0xf]
      %v434 = vld [vmem:[%s431 + $0x8] sm:$0xf]
      %v435 = vld [vmem:[%s431 + $0xc] sm:$0xf]
      %v436 = vld [vmem:[%s431 + $0x10] sm:$0xf]
      %v437 = vld [vmem:[%s431 + $0x14] sm:$0xf]
      %v438 = vld [vmem:[%s431 + $0x18] sm:$0xf]
      %v439 = vld [vmem:[%s431 + $0x1c] sm:$0xf]
      %v440 = vld [vmem:[%s431 + $0x20] sm:$0xf]
      %v441 = vld [vmem:[%s431 + $0x24] sm:$0xf]
      %v442 = vld [vmem:[%s431 + $0x28] sm:$0xf]
      %v443 = vld [vmem:[%s431 + $0x2c] sm:$0xf]
      %v444 = vld [vmem:[%s431 + $0x30] sm:$0x3]
      %v458 = vunpack.c.l.b16 %v432
      %v459 = vunpack.c.l.b16 %v433
      %v460 = vunpack.c.l.b16 %v434
      %v461 = vunpack.c.l.b16 %v435
      %v462 = vunpack.c.l.b16 %v436
      %v463 = vunpack.c.l.b16 %v437
      %v464 = vunpack.c.l.b16 %v438
      %v465 = vunpack.c.l.b16 %v439
      %v466 = vunpack.c.l.b16 %v440
      %v467 = vunpack.c.l.b16 %v441
      %v468 = vunpack.c.l.b16 %v442
      %v469 = vunpack.c.l.b16 %v443
      %v470 = vunpack.c.l.b16 %v444
      %v471 = vpack.c.b16 %v459, %v458
      %v472 = vpack.c.b16 %v461, %v460
      %v473 = vpack.c.b16 %v463, %v462
      %v474 = vpack.c.b16 %v465, %v464
      %v475 = vpack.c.b16 %v467, %v466
      %v476 = vpack.c.b16 %v469, %v468
      %v477 = vpack.c.b16 %v470, %v470
      %v479 = vsel %vm238, %v471, 0
      %v482 = vsel %vm238, %v472, 0
      %v485 = vsel %vm238, %v473, 0
      %v488 = vsel %vm238, %v474, 0
      %v491 = vsel %vm238, %v475, 0
      %v494 = vsel %vm238, %v476, 0
      %v497 = vsel %vm238, %v477, 0
      %499 = vmatpush.bf16.msra.mxu0 0
      %500 = vmatpush.bf16.msra.mxu0 0
      %501 = vmatpush.bf16.msra.mxu0 0
      %502 = vmatpush.bf16.msra.mxu0 0
      %503 = vmatpush.bf16.msra.mxu0 0
      %504 = vmatpush.bf16.msra.mxu0 %v262
      %505 = vmatpush.bf16.msra.mxu0 %v234
      %506 = vmatpush.bf16.msra.mxu0 %v233
      %507 = vmatmul.bf16.gmra.mxu0 %v479
      %v508 = vpop.f32.mrf.mxu0
      %v509 = vadd.f32 0.0, %v508
      %v510 = vpop.f32.mrf.mxu0
      %v511 = vadd.f32 0.0, %v510
      %512 = vmatmul.bf16.gmra.mxu0 %v482
      %v513 = vpop.f32.mrf.mxu0
      %v514 = vadd.f32 0.0, %v513
      %v515 = vpop.f32.mrf.mxu0
      %v516 = vadd.f32 0.0, %v515
      %517 = vmatmul.bf16.gmra.mxu0 %v485
      %v518 = vpop.f32.mrf.mxu0
      %v519 = vadd.f32 0.0, %v518
      %v520 = vpop.f32.mrf.mxu0
      %v521 = vadd.f32 0.0, %v520
      %522 = vmatmul.bf16.gmra.mxu0 %v488
      %v523 = vpop.f32.mrf.mxu0
      %v524 = vadd.f32 0.0, %v523
      %v525 = vpop.f32.mrf.mxu0
      %v526 = vadd.f32 0.0, %v525
      %527 = vmatmul.bf16.gmra.mxu0 %v491
      %v528 = vpop.f32.mrf.mxu0
      %v529 = vadd.f32 0.0, %v528
      %v530 = vpop.f32.mrf.mxu0
      %v531 = vadd.f32 0.0, %v530
      %532 = vmatmul.bf16.gmra.mxu0 %v494
      %v533 = vpop.f32.mrf.mxu0
      %v534 = vadd.f32 0.0, %v533
      %v535 = vpop.f32.mrf.mxu0
      %v536 = vadd.f32 0.0, %v535
      %537 = vmatmul.bf16.gmra.mxu0 %v497
      %v538 = vpop.f32.mrf.mxu0
      %v539 = vadd.f32 0.0, %v538
      %v540 = vpop.f32.mrf.mxu0
      %541 = vdwg.mxu0
      %v542 = vmax.f32 %v418, %v509
      %v543 = vmax.f32 %v419, %v511
      %v544 = vmax.f32 %v420, %v514
      %v545 = vmax.f32 %v421, %v516
      %v546 = vmax.f32 %v422, %v519
      %v547 = vmax.f32 %v423, %v521
      %v548 = vmax.f32 %v424, %v524
      %v549 = vmax.f32 %v425, %v526
      %v550 = vmax.f32 %v426, %v529
      %v551 = vmax.f32 %v427, %v531
      %v552 = vmax.f32 %v428, %v534
      %v553 = vmax.f32 %v429, %v536
      %v554 = vmax.f32 %v430, %v539
      %s555 = scalar_lea.vmem %s165, 156
      %v556 = vld [vmem:[%s555] sm:$0xf]
      %v557 = vld [vmem:[%s555 + $0x4] sm:$0xf]
      %v558 = vld [vmem:[%s555 + $0x8] sm:$0xf]
      %v559 = vld [vmem:[%s555 + $0xc] sm:$0xf]
      %v560 = vld [vmem:[%s555 + $0x10] sm:$0xf]
      %v561 = vld [vmem:[%s555 + $0x14] sm:$0xf]
      %v562 = vld [vmem:[%s555 + $0x18] sm:$0xf]
      %v563 = vld [vmem:[%s555 + $0x1c] sm:$0xf]
      %v564 = vld [vmem:[%s555 + $0x20] sm:$0xf]
      %v565 = vld [vmem:[%s555 + $0x24] sm:$0xf]
      %v566 = vld [vmem:[%s555 + $0x28] sm:$0xf]
      %v567 = vld [vmem:[%s555 + $0x2c] sm:$0xf]
      %v568 = vld [vmem:[%s555 + $0x30] sm:$0x3]
      %v582 = vunpack.c.l.b16 %v556
      %v583 = vunpack.c.l.b16 %v557
      %v584 = vunpack.c.l.b16 %v558
      %v585 = vunpack.c.l.b16 %v559
      %v586 = vunpack.c.l.b16 %v560
      %v587 = vunpack.c.l.b16 %v561
      %v588 = vunpack.c.l.b16 %v562
      %v589 = vunpack.c.l.b16 %v563
      %v590 = vunpack.c.l.b16 %v564
      %v591 = vunpack.c.l.b16 %v565
      %v592 = vunpack.c.l.b16 %v566
      %v593 = vunpack.c.l.b16 %v567
      %v594 = vunpack.c.l.b16 %v568
      %v595 = vpack.c.b16 %v583, %v582
      %v596 = vpack.c.b16 %v585, %v584
      %v597 = vpack.c.b16 %v587, %v586
      %v598 = vpack.c.b16 %v589, %v588
      %v599 = vpack.c.b16 %v591, %v590
      %v600 = vpack.c.b16 %v593, %v592
      %v601 = vpack.c.b16 %v594, %v594
      %v603 = vsel %vm238, %v595, 0
      %v606 = vsel %vm238, %v596, 0
      %v609 = vsel %vm238, %v597, 0
      %v612 = vsel %vm238, %v598, 0
      %v615 = vsel %vm238, %v599, 0
      %v618 = vsel %vm238, %v600, 0
      %v621 = vsel %vm238, %v601, 0
      %623 = vmatpush.bf16.msra.mxu0 0
      %624 = vmatpush.bf16.msra.mxu0 0
      %625 = vmatpush.bf16.msra.mxu0 0
      %626 = vmatpush.bf16.msra.mxu0 0
      %627 = vmatpush.bf16.msra.mxu0 0
      %628 = vmatpush.bf16.msra.mxu0 %v262
      %629 = vmatpush.bf16.msra.mxu0 %v234
      %630 = vmatpush.bf16.msra.mxu0 %v233
      %631 = vmatmul.bf16.gmra.mxu0 %v603
      %v632 = vpop.f32.mrf.mxu0
      %v633 = vadd.f32 0.0, %v632
      %v634 = vpop.f32.mrf.mxu0
      %v635 = vadd.f32 0.0, %v634
      %636 = vmatmul.bf16.gmra.mxu0 %v606
      %v637 = vpop.f32.mrf.mxu0
      %v638 = vadd.f32 0.0, %v637
      %v639 = vpop.f32.mrf.mxu0
      %v640 = vadd.f32 0.0, %v639
      %641 = vmatmul.bf16.gmra.mxu0 %v609
      %v642 = vpop.f32.mrf.mxu0
      %v643 = vadd.f32 0.0, %v642
      %v644 = vpop.f32.mrf.mxu0
      %v645 = vadd.f32 0.0, %v644
      %646 = vmatmul.bf16.gmra.mxu0 %v612
      %v647 = vpop.f32.mrf.mxu0
      %v648 = vadd.f32 0.0, %v647
      %v649 = vpop.f32.mrf.mxu0
      %v650 = vadd.f32 0.0, %v649
      %651 = vmatmul.bf16.gmra.mxu0 %v615
      %v652 = vpop.f32.mrf.mxu0
      %v653 = vadd.f32 0.0, %v652
      %v654 = vpop.f32.mrf.mxu0
      %v655 = vadd.f32 0.0, %v654
      %656 = vmatmul.bf16.gmra.mxu0 %v618
      %v657 = vpop.f32.mrf.mxu0
      %v658 = vadd.f32 0.0, %v657
      %v659 = vpop.f32.mrf.mxu0
      %v660 = vadd.f32 0.0, %v659
      %661 = vmatmul.bf16.gmra.mxu0 %v621
      %v662 = vpop.f32.mrf.mxu0
      %v663 = vadd.f32 0.0, %v662
      %v664 = vpop.f32.mrf.mxu0
      %665 = vdwg.mxu0
      %v666 = vmax.f32 %v542, %v633
      %v667 = vmax.f32 %v543, %v635
      %v668 = vmax.f32 %v544, %v638
      %v669 = vmax.f32 %v545, %v640
      %v670 = vmax.f32 %v546, %v643
      %v671 = vmax.f32 %v547, %v645
      %v672 = vmax.f32 %v548, %v648
      %v673 = vmax.f32 %v549, %v650
      %v674 = vmax.f32 %v550, %v653
      %v675 = vmax.f32 %v551, %v655
      %v676 = vmax.f32 %v552, %v658
      %v677 = vmax.f32 %v553, %v660
      %v678 = vmax.f32 %v554, %v663
      %s679 = scalar_lea.vmem %s165, 208
      %v680 = vld [vmem:[%s679] sm:$0xf]
      %v681 = vld [vmem:[%s679 + $0x4] sm:$0xf]
      %v682 = vld [vmem:[%s679 + $0x8] sm:$0xf]
      %v683 = vld [vmem:[%s679 + $0xc] sm:$0xf]
      %v684 = vld [vmem:[%s679 + $0x10] sm:$0xf]
      %v685 = vld [vmem:[%s679 + $0x14] sm:$0xf]
      %v686 = vld [vmem:[%s679 + $0x18] sm:$0xf]
      %v687 = vld [vmem:[%s679 + $0x1c] sm:$0xf]
      %v688 = vld [vmem:[%s679 + $0x20] sm:$0xf]
      %v689 = vld [vmem:[%s679 + $0x24] sm:$0xf]
      %v690 = vld [vmem:[%s679 + $0x28] sm:$0xf]
      %v691 = vld [vmem:[%s679 + $0x2c] sm:$0xf]
      %v692 = vld [vmem:[%s679 + $0x30] sm:$0x3]
      %v706 = vunpack.c.l.b16 %v680
      %v707 = vunpack.c.l.b16 %v681
      %v708 = vunpack.c.l.b16 %v682
      %v709 = vunpack.c.l.b16 %v683
      %v710 = vunpack.c.l.b16 %v684
      %v711 = vunpack.c.l.b16 %v685
      %v712 = vunpack.c.l.b16 %v686
      %v713 = vunpack.c.l.b16 %v687
      %v714 = vunpack.c.l.b16 %v688
      %v715 = vunpack.c.l.b16 %v689
      %v716 = vunpack.c.l.b16 %v690
      %v717 = vunpack.c.l.b16 %v691
      %v718 = vunpack.c.l.b16 %v692
      %v719 = vpack.c.b16 %v707, %v706
      %v720 = vpack.c.b16 %v709, %v708
      %v721 = vpack.c.b16 %v711, %v710
      %v722 = vpack.c.b16 %v713, %v712
      %v723 = vpack.c.b16 %v715, %v714
      %v724 = vpack.c.b16 %v717, %v716
      %v725 = vpack.c.b16 %v718, %v718
      %v727 = vsel %vm238, %v719, 0
      %v730 = vsel %vm238, %v720, 0
      %v733 = vsel %vm238, %v721, 0
      %v736 = vsel %vm238, %v722, 0
      %v739 = vsel %vm238, %v723, 0
      %v742 = vsel %vm238, %v724, 0
      %v745 = vsel %vm238, %v725, 0
      %747 = vmatpush.bf16.msra.mxu0 0
      %748 = vmatpush.bf16.msra.mxu0 0
      %749 = vmatpush.bf16.msra.mxu0 0
      %750 = vmatpush.bf16.msra.mxu0 0
      %751 = vmatpush.bf16.msra.mxu0 0
      %752 = vmatpush.bf16.msra.mxu0 %v262
      %753 = vmatpush.bf16.msra.mxu0 %v234
      %754 = vmatpush.bf16.msra.mxu0 %v233
      %755 = vmatmul.bf16.gmra.mxu0 %v727
      %v756 = vpop.f32.mrf.mxu0
      %v757 = vadd.f32 0.0, %v756
      %v758 = vpop.f32.mrf.mxu0
      %v759 = vadd.f32 0.0, %v758
      %760 = vmatmul.bf16.gmra.mxu0 %v730
      %v761 = vpop.f32.mrf.mxu0
      %v762 = vadd.f32 0.0, %v761
      %v763 = vpop.f32.mrf.mxu0
      %v764 = vadd.f32 0.0, %v763
      %765 = vmatmul.bf16.gmra.mxu0 %v733
      %v766 = vpop.f32.mrf.mxu0
      %v767 = vadd.f32 0.0, %v766
      %v768 = vpop.f32.mrf.mxu0
      %v769 = vadd.f32 0.0, %v768
      %770 = vmatmul.bf16.gmra.mxu0 %v736
      %v771 = vpop.f32.mrf.mxu0
      %v772 = vadd.f32 0.0, %v771
      %v773 = vpop.f32.mrf.mxu0
      %v774 = vadd.f32 0.0, %v773
      %775 = vmatmul.bf16.gmra.mxu0 %v739
      %v776 = vpop.f32.mrf.mxu0
      %v777 = vadd.f32 0.0, %v776
      %v778 = vpop.f32.mrf.mxu0
      %v779 = vadd.f32 0.0, %v778
      %780 = vmatmul.bf16.gmra.mxu0 %v742
      %v781 = vpop.f32.mrf.mxu0
      %v782 = vadd.f32 0.0, %v781
      %v783 = vpop.f32.mrf.mxu0
      %v784 = vadd.f32 0.0, %v783
      %785 = vmatmul.bf16.gmra.mxu0 %v745
      %v786 = vpop.f32.mrf.mxu0
      %v787 = vadd.f32 0.0, %v786
      %v788 = vpop.f32.mrf.mxu0
      %789 = vdwg.mxu0
      %v790 = vmax.f32 %v666, %v757
      %v791 = vmax.f32 %v667, %v759
      %v792 = vmax.f32 %v668, %v762
      %v793 = vmax.f32 %v669, %v764
      %v794 = vmax.f32 %v670, %v767
      %v795 = vmax.f32 %v671, %v769
      %v796 = vmax.f32 %v672, %v772
      %v797 = vmax.f32 %v673, %v774
      %v798 = vmax.f32 %v674, %v777
      %v799 = vmax.f32 %v675, %v779
      %v800 = vmax.f32 %v676, %v782
      %v801 = vmax.f32 %v677, %v784
      %v802 = vmax.f32 %v678, %v787
      %s803 = scalar_lea.vmem %s165, 260
      %v804 = vld [vmem:[%s803] sm:$0xf]
      %v805 = vld [vmem:[%s803 + $0x4] sm:$0xf]
      %v806 = vld [vmem:[%s803 + $0x8] sm:$0xf]
      %v807 = vld [vmem:[%s803 + $0xc] sm:$0xf]
      %v808 = vld [vmem:[%s803 + $0x10] sm:$0xf]
      %v809 = vld [vmem:[%s803 + $0x14] sm:$0xf]
      %v810 = vld [vmem:[%s803 + $0x18] sm:$0xf]
      %v811 = vld [vmem:[%s803 + $0x1c] sm:$0xf]
      %v812 = vld [vmem:[%s803 + $0x20] sm:$0xf]
      %v813 = vld [vmem:[%s803 + $0x24] sm:$0xf]
      %v814 = vld [vmem:[%s803 + $0x28] sm:$0xf]
      %v815 = vld [vmem:[%s803 + $0x2c] sm:$0xf]
      %v816 = vld [vmem:[%s803 + $0x30] sm:$0x3]
      %v830 = vunpack.c.l.b16 %v804
      %v831 = vunpack.c.l.b16 %v805
      %v832 = vunpack.c.l.b16 %v806
      %v833 = vunpack.c.l.b16 %v807
      %v834 = vunpack.c.l.b16 %v808
      %v835 = vunpack.c.l.b16 %v809
      %v836 = vunpack.c.l.b16 %v810
      %v837 = vunpack.c.l.b16 %v811
      %v838 = vunpack.c.l.b16 %v812
      %v839 = vunpack.c.l.b16 %v813
      %v840 = vunpack.c.l.b16 %v814
      %v841 = vunpack.c.l.b16 %v815
      %v842 = vunpack.c.l.b16 %v816
      %v843 = vpack.c.b16 %v831, %v830
      %v844 = vpack.c.b16 %v833, %v832
      %v845 = vpack.c.b16 %v835, %v834
      %v846 = vpack.c.b16 %v837, %v836
      %v847 = vpack.c.b16 %v839, %v838
      %v848 = vpack.c.b16 %v841, %v840
      %v849 = vpack.c.b16 %v842, %v842
      %v851 = vsel %vm238, %v843, 0
      %v854 = vsel %vm238, %v844, 0
      %v857 = vsel %vm238, %v845, 0
      %v860 = vsel %vm238, %v846, 0
      %v863 = vsel %vm238, %v847, 0
      %v866 = vsel %vm238, %v848, 0
      %v869 = vsel %vm238, %v849, 0
      %871 = vmatpush.bf16.msra.mxu0 0
      %872 = vmatpush.bf16.msra.mxu0 0
      %873 = vmatpush.bf16.msra.mxu0 0
      %874 = vmatpush.bf16.msra.mxu0 0
      %875 = vmatpush.bf16.msra.mxu0 0
      %876 = vmatpush.bf16.msra.mxu0 %v262
      %877 = vmatpush.bf16.msra.mxu0 %v234
      %878 = vmatpush.bf16.msra.mxu0 %v233
      %879 = vmatmul.bf16.gmra.mxu0 %v851
      %v880 = vpop.f32.mrf.mxu0
      %v881 = vadd.f32 0.0, %v880
      %v882 = vpop.f32.mrf.mxu0
      %v883 = vadd.f32 0.0, %v882
      %884 = vmatmul.bf16.gmra.mxu0 %v854
      %v885 = vpop.f32.mrf.mxu0
      %v886 = vadd.f32 0.0, %v885
      %v887 = vpop.f32.mrf.mxu0
      %v888 = vadd.f32 0.0, %v887
      %889 = vmatmul.bf16.gmra.mxu0 %v857
      %v890 = vpop.f32.mrf.mxu0
      %v891 = vadd.f32 0.0, %v890
      %v892 = vpop.f32.mrf.mxu0
      %v893 = vadd.f32 0.0, %v892
      %894 = vmatmul.bf16.gmra.mxu0 %v860
      %v895 = vpop.f32.mrf.mxu0
      %v896 = vadd.f32 0.0, %v895
      %v897 = vpop.f32.mrf.mxu0
      %v898 = vadd.f32 0.0, %v897
      %899 = vmatmul.bf16.gmra.mxu0 %v863
      %v900 = vpop.f32.mrf.mxu0
      %v901 = vadd.f32 0.0, %v900
      %v902 = vpop.f32.mrf.mxu0
      %v903 = vadd.f32 0.0, %v902
      %904 = vmatmul.bf16.gmra.mxu0 %v866
      %v905 = vpop.f32.mrf.mxu0
      %v906 = vadd.f32 0.0, %v905
      %v907 = vpop.f32.mrf.mxu0
      %v908 = vadd.f32 0.0, %v907
      %909 = vmatmul.bf16.gmra.mxu0 %v869
      %v910 = vpop.f32.mrf.mxu0
      %v911 = vadd.f32 0.0, %v910
      %v912 = vpop.f32.mrf.mxu0
      %913 = vdwg.mxu0
      %v914 = vmax.f32 %v790, %v881
      %v915 = vmax.f32 %v791, %v883
      %v916 = vmax.f32 %v792, %v886
      %v917 = vmax.f32 %v793, %v888
      %v918 = vmax.f32 %v794, %v891
      %v919 = vmax.f32 %v795, %v893
      %v920 = vmax.f32 %v796, %v896
      %v921 = vmax.f32 %v797, %v898
      %v922 = vmax.f32 %v798, %v901
      %v923 = vmax.f32 %v799, %v903
      %v924 = vmax.f32 %v800, %v906
      %v925 = vmax.f32 %v801, %v908
      %v926 = vmax.f32 %v802, %v911
      %s927 = scalar_lea.vmem %s165, 312
      %v928 = vld [vmem:[%s927] sm:$0xf]
      %v929 = vld [vmem:[%s927 + $0x4] sm:$0xf]
      %v930 = vld [vmem:[%s927 + $0x8] sm:$0xf]
      %v931 = vld [vmem:[%s927 + $0xc] sm:$0xf]
      %v932 = vld [vmem:[%s927 + $0x10] sm:$0xf]
      %v933 = vld [vmem:[%s927 + $0x14] sm:$0xf]
      %v934 = vld [vmem:[%s927 + $0x18] sm:$0xf]
      %v935 = vld [vmem:[%s927 + $0x1c] sm:$0xf]
      %v936 = vld [vmem:[%s927 + $0x20] sm:$0xf]
      %v937 = vld [vmem:[%s927 + $0x24] sm:$0xf]
      %v938 = vld [vmem:[%s927 + $0x28] sm:$0xf]
      %v939 = vld [vmem:[%s927 + $0x2c] sm:$0xf]
      %v940 = vld [vmem:[%s927 + $0x30] sm:$0x3]
      %v954 = vunpack.c.l.b16 %v928
      %v955 = vunpack.c.l.b16 %v929
      %v956 = vunpack.c.l.b16 %v930
      %v957 = vunpack.c.l.b16 %v931
      %v958 = vunpack.c.l.b16 %v932
      %v959 = vunpack.c.l.b16 %v933
      %v960 = vunpack.c.l.b16 %v934
      %v961 = vunpack.c.l.b16 %v935
      %v962 = vunpack.c.l.b16 %v936
      %v963 = vunpack.c.l.b16 %v937
      %v964 = vunpack.c.l.b16 %v938
      %v965 = vunpack.c.l.b16 %v939
      %v966 = vunpack.c.l.b16 %v940
      %v967 = vpack.c.b16 %v955, %v954
      %v968 = vpack.c.b16 %v957, %v956
      %v969 = vpack.c.b16 %v959, %v958
      %v970 = vpack.c.b16 %v961, %v960
      %v971 = vpack.c.b16 %v963, %v962
      %v972 = vpack.c.b16 %v965, %v964
      %v973 = vpack.c.b16 %v966, %v966
      %v975 = vsel %vm238, %v967, 0
      %v978 = vsel %vm238, %v968, 0
      %v981 = vsel %vm238, %v969, 0
      %v984 = vsel %vm238, %v970, 0
      %v987 = vsel %vm238, %v971, 0
      %v990 = vsel %vm238, %v972, 0
      %v993 = vsel %vm238, %v973, 0
      %995 = vmatpush.bf16.msra.mxu0 0
      %996 = vmatpush.bf16.msra.mxu0 0
      %997 = vmatpush.bf16.msra.mxu0 0
      %998 = vmatpush.bf16.msra.mxu0 0
      %999 = vmatpush.bf16.msra.mxu0 0
      %1000 = vmatpush.bf16.msra.mxu0 %v262
      %1001 = vmatpush.bf16.msra.mxu0 %v234
      %1002 = vmatpush.bf16.msra.mxu0 %v233
      %1003 = vmatmul.bf16.gmra.mxu0 %v975
      %v1004 = vpop.f32.mrf.mxu0
      %v1005 = vadd.f32 0.0, %v1004
      %v1006 = vpop.f32.mrf.mxu0
      %v1007 = vadd.f32 0.0, %v1006
      %1008 = vmatmul.bf16.gmra.mxu0 %v978
      %v1009 = vpop.f32.mrf.mxu0
      %v1010 = vadd.f32 0.0, %v1009
      %v1011 = vpop.f32.mrf.mxu0
      %v1012 = vadd.f32 0.0, %v1011
      %1013 = vmatmul.bf16.gmra.mxu0 %v981
      %v1014 = vpop.f32.mrf.mxu0
      %v1015 = vadd.f32 0.0, %v1014
      %v1016 = vpop.f32.mrf.mxu0
      %v1017 = vadd.f32 0.0, %v1016
      %1018 = vmatmul.bf16.gmra.mxu0 %v984
      %v1019 = vpop.f32.mrf.mxu0
      %v1020 = vadd.f32 0.0, %v1019
      %v1021 = vpop.f32.mrf.mxu0
      %v1022 = vadd.f32 0.0, %v1021
      %1023 = vmatmul.bf16.gmra.mxu0 %v987
      %v1024 = vpop.f32.mrf.mxu0
      %v1025 = vadd.f32 0.0, %v1024
      %v1026 = vpop.f32.mrf.mxu0
      %v1027 = vadd.f32 0.0, %v1026
      %1028 = vmatmul.bf16.gmra.mxu0 %v990
      %v1029 = vpop.f32.mrf.mxu0
      %v1030 = vadd.f32 0.0, %v1029
      %v1031 = vpop.f32.mrf.mxu0
      %v1032 = vadd.f32 0.0, %v1031
      %1033 = vmatmul.bf16.gmra.mxu0 %v993
      %v1034 = vpop.f32.mrf.mxu0
      %v1035 = vadd.f32 0.0, %v1034
      %v1036 = vpop.f32.mrf.mxu0
      %1037 = vdwg.mxu0
      %v1038 = vmax.f32 %v914, %v1005
      %v1039 = vmax.f32 %v915, %v1007
      %v1040 = vmax.f32 %v916, %v1010
      %v1041 = vmax.f32 %v917, %v1012
      %v1042 = vmax.f32 %v918, %v1015
      %v1043 = vmax.f32 %v919, %v1017
      %v1044 = vmax.f32 %v920, %v1020
      %v1045 = vmax.f32 %v921, %v1022
      %v1046 = vmax.f32 %v922, %v1025
      %v1047 = vmax.f32 %v923, %v1027
      %v1048 = vmax.f32 %v924, %v1030
      %v1049 = vmax.f32 %v925, %v1032
      %v1050 = vmax.f32 %v926, %v1035
      %s1051 = scalar_lea.vmem %s165, 364
      %v1052 = vld [vmem:[%s1051] sm:$0xf]
      %v1053 = vld [vmem:[%s1051 + $0x4] sm:$0xf]
      %v1054 = vld [vmem:[%s1051 + $0x8] sm:$0xf]
      %v1055 = vld [vmem:[%s1051 + $0xc] sm:$0xf]
      %v1056 = vld [vmem:[%s1051 + $0x10] sm:$0xf]
      %v1057 = vld [vmem:[%s1051 + $0x14] sm:$0xf]
      %v1058 = vld [vmem:[%s1051 + $0x18] sm:$0xf]
      %v1059 = vld [vmem:[%s1051 + $0x1c] sm:$0xf]
      %v1060 = vld [vmem:[%s1051 + $0x20] sm:$0xf]
      %v1061 = vld [vmem:[%s1051 + $0x24] sm:$0xf]
      %v1062 = vld [vmem:[%s1051 + $0x28] sm:$0xf]
      %v1063 = vld [vmem:[%s1051 + $0x2c] sm:$0xf]
      %v1064 = vld [vmem:[%s1051 + $0x30] sm:$0x3]
      %v1078 = vunpack.c.l.b16 %v1052
      %v1079 = vunpack.c.l.b16 %v1053
      %v1080 = vunpack.c.l.b16 %v1054
      %v1081 = vunpack.c.l.b16 %v1055
      %v1082 = vunpack.c.l.b16 %v1056
      %v1083 = vunpack.c.l.b16 %v1057
      %v1084 = vunpack.c.l.b16 %v1058
      %v1085 = vunpack.c.l.b16 %v1059
      %v1086 = vunpack.c.l.b16 %v1060
      %v1087 = vunpack.c.l.b16 %v1061
      %v1088 = vunpack.c.l.b16 %v1062
      %v1089 = vunpack.c.l.b16 %v1063
      %v1090 = vunpack.c.l.b16 %v1064
      %v1091 = vpack.c.b16 %v1079, %v1078
      %v1092 = vpack.c.b16 %v1081, %v1080
      %v1093 = vpack.c.b16 %v1083, %v1082
      %v1094 = vpack.c.b16 %v1085, %v1084
      %v1095 = vpack.c.b16 %v1087, %v1086
      %v1096 = vpack.c.b16 %v1089, %v1088
      %v1097 = vpack.c.b16 %v1090, %v1090
      %v1099 = vsel %vm238, %v1091, 0
      %v1102 = vsel %vm238, %v1092, 0
      %v1105 = vsel %vm238, %v1093, 0
      %v1108 = vsel %vm238, %v1094, 0
      %v1111 = vsel %vm238, %v1095, 0
      %v1114 = vsel %vm238, %v1096, 0
      %v1117 = vsel %vm238, %v1097, 0
      %1119 = vmatpush.bf16.msra.mxu0 0
      %1120 = vmatpush.bf16.msra.mxu0 0
      %1121 = vmatpush.bf16.msra.mxu0 0
      %1122 = vmatpush.bf16.msra.mxu0 0
      %1123 = vmatpush.bf16.msra.mxu0 0
      %1124 = vmatpush.bf16.msra.mxu0 %v262
      %1125 = vmatpush.bf16.msra.mxu0 %v234
      %1126 = vmatpush.bf16.msra.mxu0 %v233
      %1127 = vmatmul.bf16.gmra.mxu0 %v1099
      %v1128 = vpop.f32.mrf.mxu0
      %v1129 = vadd.f32 0.0, %v1128
      %v1130 = vpop.f32.mrf.mxu0
      %v1131 = vadd.f32 0.0, %v1130
      %1132 = vmatmul.bf16.gmra.mxu0 %v1102
      %v1133 = vpop.f32.mrf.mxu0
      %v1134 = vadd.f32 0.0, %v1133
      %v1135 = vpop.f32.mrf.mxu0
      %v1136 = vadd.f32 0.0, %v1135
      %1137 = vmatmul.bf16.gmra.mxu0 %v1105
      %v1138 = vpop.f32.mrf.mxu0
      %v1139 = vadd.f32 0.0, %v1138
      %v1140 = vpop.f32.mrf.mxu0
      %v1141 = vadd.f32 0.0, %v1140
      %1142 = vmatmul.bf16.gmra.mxu0 %v1108
      %v1143 = vpop.f32.mrf.mxu0
      %v1144 = vadd.f32 0.0, %v1143
      %v1145 = vpop.f32.mrf.mxu0
      %v1146 = vadd.f32 0.0, %v1145
      %1147 = vmatmul.bf16.gmra.mxu0 %v1111
      %v1148 = vpop.f32.mrf.mxu0
      %v1149 = vadd.f32 0.0, %v1148
      %v1150 = vpop.f32.mrf.mxu0
      %v1151 = vadd.f32 0.0, %v1150
      %1152 = vmatmul.bf16.gmra.mxu0 %v1114
      %v1153 = vpop.f32.mrf.mxu0
      %v1154 = vadd.f32 0.0, %v1153
      %v1155 = vpop.f32.mrf.mxu0
      %v1156 = vadd.f32 0.0, %v1155
      %1157 = vmatmul.bf16.gmra.mxu0 %v1117
      %v1158 = vpop.f32.mrf.mxu0
      %v1159 = vadd.f32 0.0, %v1158
      %v1160 = vpop.f32.mrf.mxu0
      %1161 = vdwg.mxu0
      %v1162 = vmax.f32 %v1038, %v1129
      %v1163 = vmax.f32 %v1039, %v1131
      %v1164 = vmax.f32 %v1040, %v1134
      %v1165 = vmax.f32 %v1041, %v1136
      %v1166 = vmax.f32 %v1042, %v1139
      %v1167 = vmax.f32 %v1043, %v1141
      %v1168 = vmax.f32 %v1044, %v1144
      %v1169 = vmax.f32 %v1045, %v1146
      %v1170 = vmax.f32 %v1046, %v1149
      %v1171 = vmax.f32 %v1047, %v1151
      %v1172 = vmax.f32 %v1048, %v1154
      %v1173 = vmax.f32 %v1049, %v1156
      %v1174 = vmax.f32 %v1050, %v1159
      %s1175 = scalar_lea.vmem %s165, 416
      %v1176 = vld [vmem:[%s1175] sm:$0xf]
      %v1177 = vld [vmem:[%s1175 + $0x4] sm:$0xf]
      %v1178 = vld [vmem:[%s1175 + $0x8] sm:$0xf]
      %v1179 = vld [vmem:[%s1175 + $0xc] sm:$0xf]
      %v1180 = vld [vmem:[%s1175 + $0x10] sm:$0xf]
      %v1181 = vld [vmem:[%s1175 + $0x14] sm:$0xf]
      %v1182 = vld [vmem:[%s1175 + $0x18] sm:$0xf]
      %v1183 = vld [vmem:[%s1175 + $0x1c] sm:$0xf]
      %v1184 = vld [vmem:[%s1175 + $0x20] sm:$0xf]
      %v1185 = vld [vmem:[%s1175 + $0x24] sm:$0xf]
      %v1186 = vld [vmem:[%s1175 + $0x28] sm:$0xf]
      %v1187 = vld [vmem:[%s1175 + $0x2c] sm:$0xf]
      %v1188 = vld [vmem:[%s1175 + $0x30] sm:$0x3]
      %v1202 = vunpack.c.l.b16 %v1176
      %v1203 = vunpack.c.l.b16 %v1177
      %v1204 = vunpack.c.l.b16 %v1178
      %v1205 = vunpack.c.l.b16 %v1179
      %v1206 = vunpack.c.l.b16 %v1180
      %v1207 = vunpack.c.l.b16 %v1181
      %v1208 = vunpack.c.l.b16 %v1182
      %v1209 = vunpack.c.l.b16 %v1183
      %v1210 = vunpack.c.l.b16 %v1184
      %v1211 = vunpack.c.l.b16 %v1185
      %v1212 = vunpack.c.l.b16 %v1186
      %v1213 = vunpack.c.l.b16 %v1187
      %v1214 = vunpack.c.l.b16 %v1188
      %v1215 = vpack.c.b16 %v1203, %v1202
      %v1216 = vpack.c.b16 %v1205, %v1204
      %v1217 = vpack.c.b16 %v1207, %v1206
      %v1218 = vpack.c.b16 %v1209, %v1208
      %v1219 = vpack.c.b16 %v1211, %v1210
      %v1220 = vpack.c.b16 %v1213, %v1212
      %v1221 = vpack.c.b16 %v1214, %v1214
      %v1223 = vsel %vm238, %v1215, 0
      %v1226 = vsel %vm238, %v1216, 0
      %v1229 = vsel %vm238, %v1217, 0
      %v1232 = vsel %vm238, %v1218, 0
      %v1235 = vsel %vm238, %v1219, 0
      %v1238 = vsel %vm238, %v1220, 0
      %v1241 = vsel %vm238, %v1221, 0
      %1243 = vmatpush.bf16.msra.mxu0 0
      %1244 = vmatpush.bf16.msra.mxu0 0
      %1245 = vmatpush.bf16.msra.mxu0 0
      %1246 = vmatpush.bf16.msra.mxu0 0
      %1247 = vmatpush.bf16.msra.mxu0 0
      %1248 = vmatpush.bf16.msra.mxu0 %v262
      %1249 = vmatpush.bf16.msra.mxu0 %v234
      %1250 = vmatpush.bf16.msra.mxu0 %v233
      %1251 = vmatmul.bf16.gmra.mxu0 %v1223
      %v1252 = vpop.f32.mrf.mxu0
      %v1253 = vadd.f32 0.0, %v1252
      %v1254 = vpop.f32.mrf.mxu0
      %v1255 = vadd.f32 0.0, %v1254
      %1256 = vmatmul.bf16.gmra.mxu0 %v1226
      %v1257 = vpop.f32.mrf.mxu0
      %v1258 = vadd.f32 0.0, %v1257
      %v1259 = vpop.f32.mrf.mxu0
      %v1260 = vadd.f32 0.0, %v1259
      %1261 = vmatmul.bf16.gmra.mxu0 %v1229
      %v1262 = vpop.f32.mrf.mxu0
      %v1263 = vadd.f32 0.0, %v1262
      %v1264 = vpop.f32.mrf.mxu0
      %v1265 = vadd.f32 0.0, %v1264
      %1266 = vmatmul.bf16.gmra.mxu0 %v1232
      %v1267 = vpop.f32.mrf.mxu0
      %v1268 = vadd.f32 0.0, %v1267
      %v1269 = vpop.f32.mrf.mxu0
      %v1270 = vadd.f32 0.0, %v1269
      %1271 = vmatmul.bf16.gmra.mxu0 %v1235
      %v1272 = vpop.f32.mrf.mxu0
      %v1273 = vadd.f32 0.0, %v1272
      %v1274 = vpop.f32.mrf.mxu0
      %v1275 = vadd.f32 0.0, %v1274
      %1276 = vmatmul.bf16.gmra.mxu0 %v1238
      %v1277 = vpop.f32.mrf.mxu0
      %v1278 = vadd.f32 0.0, %v1277
      %v1279 = vpop.f32.mrf.mxu0
      %v1280 = vadd.f32 0.0, %v1279
      %1281 = vmatmul.bf16.gmra.mxu0 %v1241
      %v1282 = vpop.f32.mrf.mxu0
      %v1283 = vadd.f32 0.0, %v1282
      %v1284 = vpop.f32.mrf.mxu0
      %1285 = vdwg.mxu0
      %v1286 = vmax.f32 %v1162, %v1253
      %v1287 = vmax.f32 %v1163, %v1255
      %v1288 = vmax.f32 %v1164, %v1258
      %v1289 = vmax.f32 %v1165, %v1260
      %v1290 = vmax.f32 %v1166, %v1263
      %v1291 = vmax.f32 %v1167, %v1265
      %v1292 = vmax.f32 %v1168, %v1268
      %v1293 = vmax.f32 %v1169, %v1270
      %v1294 = vmax.f32 %v1170, %v1273
      %v1295 = vmax.f32 %v1171, %v1275
      %v1296 = vmax.f32 %v1172, %v1278
      %v1297 = vmax.f32 %v1173, %v1280
      %v1298 = vmax.f32 %v1174, %v1283
      %v1299 = vld [vmem:[%s2] sm:$0x1]
      %v1301 = vperm.slane %v1299, 0
      %v1303 = vadd.f32 %v1286, %v1301
      %v1304 = vadd.f32 %v1287, %v1301
      %v1305 = vadd.f32 %v1288, %v1301
      %v1306 = vadd.f32 %v1289, %v1301
      %v1307 = vadd.f32 %v1290, %v1301
      %v1308 = vadd.f32 %v1291, %v1301
      %v1309 = vadd.f32 %v1292, %v1301
      %v1310 = vadd.f32 %v1293, %v1301
      %v1311 = vadd.f32 %v1294, %v1301
      %v1312 = vadd.f32 %v1295, %v1301
      %v1313 = vadd.f32 %v1296, %v1301
      %v1314 = vadd.f32 %v1297, %v1301
      %v1315 = vadd.f32 %v1298, %v1301
      %v1316 = vmax.f32 %v1303, 0.0
      %v1317 = vmax.f32 %v1304, 0.0
      %v1318 = vmax.f32 %v1305, 0.0
      %v1319 = vmax.f32 %v1306, 0.0
      %v1320 = vmax.f32 %v1307, 0.0
      %v1321 = vmax.f32 %v1308, 0.0
      %v1322 = vmax.f32 %v1309, 0.0
      %v1323 = vmax.f32 %v1310, 0.0
      %v1324 = vmax.f32 %v1311, 0.0
      %v1325 = vmax.f32 %v1312, 0.0
      %v1326 = vmax.f32 %v1313, 0.0
      %v1327 = vmax.f32 %v1314, 0.0
      %v1328 = vmax.f32 %v1315, 0.0
      %v1329 = vpack.c.bf16 %v1316, %v1316
      %v1330 = vpack.c.bf16 %v1317, %v1317
      %v1331 = vpack.c.bf16 %v1318, %v1318
      %v1332 = vpack.c.bf16 %v1319, %v1319
      %v1333 = vpack.c.bf16 %v1320, %v1320
      %v1334 = vpack.c.bf16 %v1321, %v1321
      %v1335 = vpack.c.bf16 %v1322, %v1322
      %v1336 = vpack.c.bf16 %v1323, %v1323
      %v1337 = vpack.c.bf16 %v1324, %v1324
      %v1338 = vpack.c.bf16 %v1325, %v1325
      %v1339 = vpack.c.bf16 %v1326, %v1326
      %v1340 = vpack.c.bf16 %v1327, %v1327
      %v1341 = vpack.c.bf16 %v1328, %v1328
      %vm1342 = vcmask 519168
      %1343 = vst.msk [vmem:[%s170] sm:$0xf] %vm1342, %v1329
      %1344 = vst.msk [vmem:[%s170 + $0x4] sm:$0xf] %vm1342, %v1330
      %1345 = vst.msk [vmem:[%s170 + $0x8] sm:$0xf] %vm1342, %v1331
      %1346 = vst.msk [vmem:[%s170 + $0xc] sm:$0xf] %vm1342, %v1332
      %1347 = vst.msk [vmem:[%s170 + $0x10] sm:$0xf] %vm1342, %v1333
      %1348 = vst.msk [vmem:[%s170 + $0x14] sm:$0xf] %vm1342, %v1334
      %1349 = vst.msk [vmem:[%s170 + $0x18] sm:$0xf] %vm1342, %v1335
      %1350 = vst.msk [vmem:[%s170 + $0x1c] sm:$0xf] %vm1342, %v1336
      %1351 = vst.msk [vmem:[%s170 + $0x20] sm:$0xf] %vm1342, %v1337
      %1352 = vst.msk [vmem:[%s170 + $0x24] sm:$0xf] %vm1342, %v1338
      %1353 = vst.msk [vmem:[%s170 + $0x28] sm:$0xf] %vm1342, %v1339
      %1354 = vst.msk [vmem:[%s170 + $0x2c] sm:$0xf] %vm1342, %v1340
      %vm1355 = vcmask 517120
      %1356 = vst.msk [vmem:[%s170 + $0x30] sm:$0x3] %vm1355, %v1341
      %p1357 = scmp.lt.s32.totalorder %s14, 1
      %s1358 = scalar_select %p1357, %s14, 1
      %s1359 = smul.addr %s1358, 13
      %s1360 = smul.addr %s1359, 4
      %s1361 = scalar_lea.vmem %s3, %s1360
      // Predicated region
      $region33: #{autocalibration13_forward.2} parent=31 // pred_check
        %p1362 = pneg %p100
      $region34: #{autocalibration13_forward.2} parent=31 // pred_check_branch
        %1364 = sbr.rel (%p1362) target = $region36
      $region35: #{autocalibration13_forward.2} parent=31 // pred_region
        _
      $region36: #{autocalibration13_forward.2} parent=31 // pred_fallthru
        _
    $region32: #{autocalibration13_forward.2} parent=5 // pred_fallthru
      _
    %p1365 = scmp.le.s32.totalorder 2, %s9
    // Predicated region
    $region37: #{autocalibration13_forward.2} parent=5 // pred_check
      %p1366 = pneg %p1365
    $region38: #{autocalibration13_forward.2} parent=5 // pred_check_branch
      %1368 = sbr.rel (%p1366) target = $region40
    $region39: #{autocalibration13_forward.2} parent=5 // pred_region
      %s1369 = ssub.s32 %s9, 2
      // Predicated region
      $region41: #{autocalibration13_forward.2} parent=39 // pred_check
        %p1370 = pneg %p106
      $region42: #{autocalibration13_forward.2} parent=39 // pred_check_branch
        %1372 = sbr.rel (%p1370) target = $region44
      $region43: #{autocalibration13_forward.2} parent=39 // pred_region
        %p1373 = scmp.lt.s32.totalorder %s15, 1
        %s1374 = scalar_select %p1373, %s15, 1
        %s1375 = smul.addr %s1374, 13
        %s1376 = smul.addr %s1375, 4
        %s1377 = scalar_lea.vmem %s3, %s1376
      $region44: #{autocalibration13_forward.2} parent=39 // pred_fallthru
        _
    $region40: #{autocalibration13_forward.2} parent=5 // pred_fallthru
      _
  $region6: #{autocalibration13_forward.2} parent=0 // loop_footer
    %s13 = sadd.s32 1, %s9
  $region7: #{autocalibration13_forward.2} parent=0 // loop_footer_branch
    %8 = sbr.rel target = $region3
  $region8: #{autocalibration13_forward.2} parent=0 // loop_exit
    _

// kernel: autocalibration13_forward.3
$region0: #{autocalibration13_forward.3}
  #allocation0 [shape = 'u32[]', space=smem, size = 0x4, offset = 0x4, fixed_abs, tag = 'smem constant byte address 0x4 - core index']
  #allocation1 [shape = 'u32[72,128]{1,0:T(1,128)}', space=vmem, size = 0x9000, scoped, tag = 'internal scratch']
  %s0 = inlined_call_operand.vmem [shape: bf16[2,9,4,576], index: 0, kind: input, shape index: {}]
  %s1 = inlined_call_operand.vmem [shape: bf16[576,128], index: 1, kind: input, shape index: {}]
  %s2 = inlined_call_operand.vmem [shape: f32[1,128], index: 2, kind: input, shape index: {}]
  %s3 = inlined_call_operand.vmem [shape: f32[4,128,16], index: 3, kind: input, shape index: {}]
  %s4 = inlined_call_operand.vmem [shape: f32[1,16], index: 4, kind: input, shape index: {}]
  %s5 = inlined_call_operand.vmem [shape: f32[2,1,16], index: 5, kind: output, shape index: {}]
  %s6 = sld [smem:[#allocation0]]
  $region53: #{autocalibration13_forward.3} parent=0
    _
  %s8 = ssub.s32 1, %s6
  %s9 = scalar_select 0, %s8, %s6
  loop: start=0, step=1, limit=4
  $region2: #{autocalibration13_forward.3} parent=0 // loop_pre_header
    _
  $region3: #{autocalibration13_forward.3} parent=0 // loop_header
    %s11 = sphi 0, %s15
    %p12 = scmp.ge.s32.totalorder %s11, 4
    %s21 = sphi 0, %s23
    %s24 = sphi 0, %s21
    %s25 = sphi 0, %s24
    %s41 = sphi 0, %s25
    %s45 = sphi 0, %s45
    %s47 = sphi 0, %s45
    %s48 = sphi 0, %s47
    %s62 = sphi 0, %s48
    %s66 = sphi 0, %s66
    %s68 = sphi 0, %s66
    %s69 = sphi 0, %s68
    %s83 = sphi 0, %s69
    %s87 = sphi 0, %s87
    %s89 = sphi 0, %s87
    %s90 = sphi 0, %s89
    %s104 = sphi 0, %s90
    %s108 = sphi 0, %s108
    %s110 = sphi 0, %s108
    %s111 = sphi 0, %s110
    %s125 = sphi 0, %s111
    %s131 = sphi 0, %s133
    %s134 = sphi 0, %s131
    %s135 = sphi 0, %s134
    %s151 = sphi 0, %s135
  $region4: #{autocalibration13_forward.3} parent=0 // loop_header_branch
    %14 = sbr.rel (%p12) target = $region8
  $region5: #{autocalibration13_forward.3} parent=0 // loop_body
    %s16 = ssub.s32 %s11, 1
    %s17 = ssub.s32 %s11, 2
    %s18 = sadd.s32 %s11, 1
    %s19 = ssub.s32 %s11, %s18
    %p20 = scmp.eq.s32.totalorder %s19, 0
    %s22 = sadd.s32 %s21, 1
    %s23 = scalar_select %p20, %s21, %s22
    %p26 = pneg %p20
    %p27 = scmp.eq.s32.totalorder %s11, 1
    %p28 = por %p26, %p27
    %p29 = scmp.ne.s32.totalorder %s21, %s24
    %p30 = scmp.eq.s32.totalorder %s11, 0
    %p31 = por %p29, %p30
    %p32 = scmp.ne.s32.totalorder %s21, %s24
    %p33 = scmp.eq.s32.totalorder %s16, 1
    %p34 = por %p32, %p33
    %p35 = scmp.ne.s32.totalorder %s24, %s25
    %p36 = scmp.eq.s32.totalorder %s16, 0
    %p37 = por %p35, %p36
    %p38 = scmp.ne.s32.totalorder %s24, %s25
    %p39 = scmp.eq.s32.totalorder %s17, 1
    %p40 = por %p38, %p39
    %p42 = scmp.ne.s32.totalorder %s25, %s41
    %p43 = scmp.eq.s32.totalorder %s17, 0
    %p44 = por %p42, %p43
    %s46 = sadd.s32 %s45, 1
    %p49 = scmp.eq.s32.totalorder %s11, 1
    %p50 = scmp.ne.s32.totalorder %s45, %s47
    %p51 = scmp.eq.s32.totalorder %s11, 0
    %p52 = por %p50, %p51
    %p53 = scmp.ne.s32.totalorder %s45, %s47
    %p54 = scmp.eq.s32.totalorder %s16, 1
    %p55 = por %p53, %p54
    %p56 = scmp.ne.s32.totalorder %s47, %s48
    %p57 = scmp.eq.s32.totalorder %s16, 0
    %p58 = por %p56, %p57
    %p59 = scmp.ne.s32.totalorder %s47, %s48
    %p60 = scmp.eq.s32.totalorder %s17, 1
    %p61 = por %p59, %p60
    %p63 = scmp.ne.s32.totalorder %s48, %s62
    %p64 = scmp.eq.s32.totalorder %s17, 0
    %p65 = por %p63, %p64
    %s67 = sadd.s32 %s66, 1
    %p70 = scmp.eq.s32.totalorder %s11, 1
    %p71 = scmp.ne.s32.totalorder %s66, %s68
    %p72 = scmp.eq.s32.totalorder %s11, 0
    %p73 = por %p71, %p72
    %p74 = scmp.ne.s32.totalorder %s66, %s68
    %p75 = scmp.eq.s32.totalorder %s16, 1
    %p76 = por %p74, %p75
    %p77 = scmp.ne.s32.totalorder %s68, %s69
    %p78 = scmp.eq.s32.totalorder %s16, 0
    %p79 = por %p77, %p78
    %p80 = scmp.ne.s32.totalorder %s68, %s69
    %p81 = scmp.eq.s32.totalorder %s17, 1
    %p82 = por %p80, %p81
    %p84 = scmp.ne.s32.totalorder %s69, %s83
    %p85 = scmp.eq.s32.totalorder %s17, 0
    %p86 = por %p84, %p85
    %s88 = sadd.s32 %s87, 1
    %p91 = scmp.eq.s32.totalorder %s11, 1
    %p92 = scmp.ne.s32.totalorder %s87, %s89
    %p93 = scmp.eq.s32.totalorder %s11, 0
    %p94 = por %p92, %p93
    %p95 = scmp.ne.s32.totalorder %s87, %s89
    %p96 = scmp.eq.s32.totalorder %s16, 1
    %p97 = por %p95, %p96
    %p98 = scmp.ne.s32.totalorder %s89, %s90
    %p99 = scmp.eq.s32.totalorder %s16, 0
    %p100 = por %p98, %p99
    %p101 = scmp.ne.s32.totalorder %s89, %s90
    %p102 = scmp.eq.s32.totalorder %s17, 1
    %p103 = por %p101, %p102
    %p105 = scmp.ne.s32.totalorder %s90, %s104
    %p106 = scmp.eq.s32.totalorder %s17, 0
    %p107 = por %p105, %p106
    %s109 = sadd.s32 %s108, 1
    %p112 = scmp.eq.s32.totalorder %s11, 1
    %p113 = scmp.ne.s32.totalorder %s108, %s110
    %p114 = scmp.eq.s32.totalorder %s11, 0
    %p115 = por %p113, %p114
    %p116 = scmp.ne.s32.totalorder %s108, %s110
    %p117 = scmp.eq.s32.totalorder %s16, 1
    %p118 = por %p116, %p117
    %p119 = scmp.ne.s32.totalorder %s110, %s111
    %p120 = scmp.eq.s32.totalorder %s16, 0
    %p121 = por %p119, %p120
    %p122 = scmp.ne.s32.totalorder %s110, %s111
    %p123 = scmp.eq.s32.totalorder %s17, 1
    %p124 = por %p122, %p123
    %p126 = scmp.ne.s32.totalorder %s111, %s125
    %p127 = scmp.eq.s32.totalorder %s17, 0
    %p128 = por %p126, %p127
    %s129 = ssub.s32 %s11, %s18
    %p130 = scmp.eq.s32.totalorder %s129, 0
    %s132 = sadd.s32 %s131, 1
    %s133 = scalar_select %p130, %s131, %s132
    %p136 = pneg %p130
    %p137 = scmp.eq.s32.totalorder %s11, 1
    %p138 = por %p136, %p137
    %p139 = scmp.ne.s32.totalorder %s131, %s134
    %p140 = scmp.eq.s32.totalorder %s11, 0
    %p141 = por %p139, %p140
    %p142 = scmp.ne.s32.totalorder %s131, %s134
    %p143 = scmp.eq.s32.totalorder %s16, 1
    %p144 = por %p142, %p143
    %p145 = scmp.ne.s32.totalorder %s134, %s135
    %p146 = scmp.eq.s32.totalorder %s16, 0
    %p147 = por %p145, %p146
    %p148 = scmp.ne.s32.totalorder %s134, %s135
    %p149 = scmp.eq.s32.totalorder %s17, 1
    %p150 = por %p148, %p149
    %p152 = scmp.ne.s32.totalorder %s135, %s151
    %p153 = scmp.eq.s32.totalorder %s17, 0
    %p154 = por %p152, %p153
    %p155 = scmp.le.s32.totalorder 1, %s11
    %p156 = scmp.lt.s32.totalorder %s11, 3
    %p157 = pnand %p155, %p156
    %p158 = pneg %p157
    // Predicated region
    $region9: #{autocalibration13_forward.3} parent=5 // pred_check
      _
    $region10: #{autocalibration13_forward.3} parent=5 // pred_check_branch
      %160 = sbr.rel (%p157) target = $region12
    $region11: #{autocalibration13_forward.3} parent=5 // pred_region
      %s161 = ssub.s32 %s11, 1
      // Predicated region
      $region13: #{autocalibration13_forward.3} parent=11 // pred_check
        %p162 = pneg %p58
      $region14: #{autocalibration13_forward.3} parent=11 // pred_check_branch
        %164 = sbr.rel (%p162) target = $region16
      $region15: #{autocalibration13_forward.3} parent=11 // pred_region
        _
      $region16: #{autocalibration13_forward.3} parent=11 // pred_fallthru
        _
      // Predicated region
      $region17: #{autocalibration13_forward.3} parent=11 // pred_check
        %p165 = pneg %p79
      $region18: #{autocalibration13_forward.3} parent=11 // pred_check_branch
        %167 = sbr.rel (%p165) target = $region20
      $region19: #{autocalibration13_forward.3} parent=11 // pred_region
        _
      $region20: #{autocalibration13_forward.3} parent=11 // pred_fallthru
        _
      // Predicated region
      $region21: #{autocalibration13_forward.3} parent=11 // pred_check
        %p168 = pneg %p100
      $region22: #{autocalibration13_forward.3} parent=11 // pred_check_branch
        %170 = sbr.rel (%p168) target = $region24
      $region23: #{autocalibration13_forward.3} parent=11 // pred_region
        _
      $region24: #{autocalibration13_forward.3} parent=11 // pred_fallthru
        _
      // Predicated region
      $region25: #{autocalibration13_forward.3} parent=11 // pred_check
        %p171 = pneg %p121
      $region26: #{autocalibration13_forward.3} parent=11 // pred_check_branch
        %173 = sbr.rel (%p171) target = $region28
      $region27: #{autocalibration13_forward.3} parent=11 // pred_region
        _
      $region28: #{autocalibration13_forward.3} parent=11 // pred_fallthru
        _
    $region12: #{autocalibration13_forward.3} parent=5 // pred_fallthru
      _
    %p174 = scmp.lt.s32.totalorder %s11, 2
    // Predicated region
    $region29: #{autocalibration13_forward.3} parent=5 // pred_check
      %p175 = pneg %p174
    $region30: #{autocalibration13_forward.3} parent=5 // pred_check_branch
      %177 = sbr.rel (%p175) target = $region32
    $region31: #{autocalibration13_forward.3} parent=5 // pred_region
      // Predicated region
      $region33: #{autocalibration13_forward.3} parent=31 // pred_check
        %p178 = pneg %p31
      $region34: #{autocalibration13_forward.3} parent=31 // pred_check_branch
        %180 = sbr.rel (%p178) target = $region36
      $region35: #{autocalibration13_forward.3} parent=31 // pred_region
        %p181 = scmp.lt.s32.totalorder %s11, 1
        %s182 = scalar_select %p181, %s11, 1
        %s183 = smul.addr %s182, 45
        %s184 = smul.addr %s183, 2
        %s185 = scalar_lea.vmem %s0, %s184
      $region36: #{autocalibration13_forward.3} parent=31 // pred_fallthru
        _
    $region32: #{autocalibration13_forward.3} parent=5 // pred_fallthru
      _
    %p186 = scmp.le.s32.totalorder 1, %s11
    %p187 = scmp.lt.s32.totalorder %s11, 3
    %p188 = pnand %p186, %p187
    %p189 = pneg %p188
    // Predicated region
    $region37: #{autocalibration13_forward.3} parent=5 // pred_check
      _
    $region38: #{autocalibration13_forward.3} parent=5 // pred_check_branch
      %191 = sbr.rel (%p188) target = $region40
    $region39: #{autocalibration13_forward.3} parent=5 // pred_region
      %s192 = ssub.s32 %s11, 1
      %p193 = scmp.lt.s32.totalorder %s16, 1
      %s194 = scalar_select %p193, %s16, 1
      %s195 = smul.addr %s194, 45
      %s196 = smul.addr %s195, 2
      %s197 = scalar_lea.vmem %s0, %s196
      %p198 = pneg %p37
      %p199 = pneg %p34
      %p200 = pneg %p58
      %p201 = pneg %p55
      %p202 = pneg %p79
      %p203 = pneg %p76
      %p204 = pneg %p100
      %p205 = pneg %p97
      %p206 = pneg %p121
      %p207 = pneg %p118
      %p208 = pneg %p147
      %p209 = pneg %p144
      %p210 = scmp.lt.s32.totalorder %s16, 1
      %s211 = scalar_select %p210, %s16, 1
      %s212 = scalar_lea.vmem %s5, %s211
      %p213 = scmp.lt.s32.totalorder %s16, 1
      %s214 = scalar_select %p213, %s16, 1
      %s215 = smul.addr %s214, 45
      %s216 = smul.addr %s215, 2
      %s217 = scalar_lea.vmem %s0, %s216
      %p218 = scmp.lt.s32.totalorder %s16, 1
      %s219 = scalar_select %p218, %s16, 1
      %s220 = scalar_lea.vmem %s5, %s219
      %v222 = vld [vmem:[%s1] sm:$0xf]
      %v223 = vld [vmem:[%s1 + $0x4] sm:$0xf]
      %v224 = vld [vmem:[%s1 + $0x8] sm:$0xf]
      %v225 = vld [vmem:[%s1 + $0xc] sm:$0xf]
      %v226 = vld [vmem:[%s1 + $0x10] sm:$0xf]
      %v227 = vld [vmem:[%s1 + $0x14] sm:$0xf]
      %v228 = vld [vmem:[%s1 + $0x18] sm:$0xf]
      %v229 = vld [vmem:[%s1 + $0x1c] sm:$0xf]
      %v230 = vld [vmem:[%s1 + $0x20] sm:$0xf]
      %v231 = vld [vmem:[%s1 + $0x24] sm:$0xf]
      %v232 = vld [vmem:[%s1 + $0x28] sm:$0xf]
      %v233 = vld [vmem:[%s1 + $0x2c] sm:$0xf]
      %v234 = vld [vmem:[%s1 + $0x30] sm:$0xf]
      %v235 = vld [vmem:[%s1 + $0x34] sm:$0xf]
      %v236 = vld [vmem:[%s1 + $0x38] sm:$0xf]
      %v237 = vld [vmem:[%s1 + $0x3c] sm:$0xf]
      %v238 = vld [vmem:[%s1 + $0x40] sm:$0xf]
      %v239 = vld [vmem:[%s1 + $0x44] sm:$0xf]
      %v240 = vld [vmem:[%s1 + $0x48] sm:$0xf]
      %v241 = vld [vmem:[%s1 + $0x4c] sm:$0xf]
      %v242 = vld [vmem:[%s1 + $0x50] sm:$0xf]
      %v243 = vld [vmem:[%s1 + $0x54] sm:$0xf]
      %v244 = vld [vmem:[%s1 + $0x58] sm:$0xf]
      %v245 = vld [vmem:[%s1 + $0x5c] sm:$0xf]
      %v246 = vld [vmem:[%s1 + $0x60] sm:$0xf]
      %v247 = vld [vmem:[%s1 + $0x64] sm:$0xf]
      %v248 = vld [vmem:[%s1 + $0x68] sm:$0xf]
      %v249 = vld [vmem:[%s1 + $0x6c] sm:$0xf]
      %v250 = vld [vmem:[%s1 + $0x70] sm:$0xf]
      %v251 = vld [vmem:[%s1 + $0x74] sm:$0xf]
      %v252 = vld [vmem:[%s1 + $0x78] sm:$0xf]
      %v253 = vld [vmem:[%s1 + $0x7c] sm:$0xf]
      %v254 = vld [vmem:[%s1 + $0x80] sm:$0xf]
      %v255 = vld [vmem:[%s1 + $0x84] sm:$0xf]
      %v256 = vld [vmem:[%s1 + $0x88] sm:$0xf]
      %v257 = vld [vmem:[%s1 + $0x8c] sm:$0xf]
      %v258 = vld [vmem:[%s1 + $0x90] sm:$0xf]
      %v259 = vld [vmem:[%s1 + $0x94] sm:$0xf]
      %v260 = vld [vmem:[%s1 + $0x98] sm:$0xf]
      %v261 = vld [vmem:[%s1 + $0x9c] sm:$0xf]
      %v262 = vld [vmem:[%s1 + $0xa0] sm:$0xf]
      %v263 = vld [vmem:[%s1 + $0xa4] sm:$0xf]
      %v264 = vld [vmem:[%s1 + $0xa8] sm:$0xf]
      %v265 = vld [vmem:[%s1 + $0xac] sm:$0xf]
      %v266 = vld [vmem:[%s1 + $0xb0] sm:$0xf]
      %v267 = vld [vmem:[%s1 + $0xb4] sm:$0xf]
      %v268 = vld [vmem:[%s1 + $0xb8] sm:$0xf]
      %v269 = vld [vmem:[%s1 + $0xbc] sm:$0xf]
      %v270 = vld [vmem:[%s1 + $0xc0] sm:$0xf]
      %v271 = vld [vmem:[%s1 + $0xc4] sm:$0xf]
      %v272 = vld [vmem:[%s1 + $0xc8] sm:$0xf]
      %v273 = vld [vmem:[%s1 + $0xcc] sm:$0xf]
      %v274 = vld [vmem:[%s1 + $0xd0] sm:$0xf]
      %v275 = vld [vmem:[%s1 + $0xd4] sm:$0xf]
      %v276 = vld [vmem:[%s1 + $0xd8] sm:$0xf]
      %v277 = vld [vmem:[%s1 + $0xdc] sm:$0xf]
      %v278 = vld [vmem:[%s1 + $0xe0] sm:$0xf]
      %v279 = vld [vmem:[%s1 + $0xe4] sm:$0xf]
      %v280 = vld [vmem:[%s1 + $0xe8] sm:$0xf]
      %v281 = vld [vmem:[%s1 + $0xec] sm:$0xf]
      %v282 = vld [vmem:[%s1 + $0xf0] sm:$0xf]
      %v283 = vld [vmem:[%s1 + $0xf4] sm:$0xf]
      %v284 = vld [vmem:[%s1 + $0xf8] sm:$0xf]
      %v285 = vld [vmem:[%s1 + $0xfc] sm:$0xf]
      %v286 = vld [vmem:[%s1 + $0x100] sm:$0xf]
      %v287 = vld [vmem:[%s1 + $0x104] sm:$0xf]
      %v288 = vld [vmem:[%s1 + $0x108] sm:$0xf]
      %v289 = vld [vmem:[%s1 + $0x10c] sm:$0xf]
      %v290 = vld [vmem:[%s1 + $0x110] sm:$0xf]
      %v291 = vld [vmem:[%s1 + $0x114] sm:$0xf]
      %v292 = vld [vmem:[%s1 + $0x118] sm:$0xf]
      %v293 = vld [vmem:[%s1 + $0x11c] sm:$0xf]
      %v294 = vld [vmem:[%s217] sm:$0xff]
      %v295 = vld [vmem:[%s217 + $0x8] sm:$0x3]
      %297 = vst [vmem:[#allocation1] ss:$4 sm:$0xff] %v294
      %s299 = scalar_lea.vmem [#allocation1], 32
      %300 = vst [vmem:[%s299] ss:$4 sm:$0xff] %v295
      %v301 = vld.sshfl [vmem:[#allocation1] sm:$0xff pattern:$0x73625140]
      %v302 = vld.sshfl [vmem:[#allocation1 + $0x8] sm:$0xff pattern:$0x73625140]
      %v303 = vld.sshfl [vmem:[#allocation1 + $0x10] sm:$0xff pattern:$0x73625140]
      %v304 = vld.sshfl [vmem:[#allocation1 + $0x18] sm:$0xff pattern:$0x73625140]
      %v305 = vld.sshfl [vmem:[#allocation1 + $0x20] sm:$0xff pattern:$0x73625140]
      %v382 = vunpack.c.l.b16 %v222
      %v383 = vunpack.c.l.b16 %v223
      %v384 = vunpack.c.l.b16 %v224
      %v385 = vunpack.c.l.b16 %v225
      %v386 = vunpack.c.l.b16 %v226
      %v387 = vunpack.c.l.b16 %v227
      %v388 = vunpack.c.l.b16 %v228
      %v389 = vunpack.c.l.b16 %v229
      %v390 = vunpack.c.l.b16 %v230
      %v391 = vunpack.c.l.b16 %v231
      %v392 = vunpack.c.l.b16 %v232
      %v393 = vunpack.c.l.b16 %v233
      %v394 = vunpack.c.l.b16 %v234
      %v395 = vunpack.c.l.b16 %v235
      %v396 = vunpack.c.l.b16 %v236
      %v397 = vunpack.c.l.b16 %v237
      %v398 = vunpack.c.l.b16 %v238
      %v399 = vunpack.c.l.b16 %v239
      %v400 = vunpack.c.l.b16 %v240
      %v401 = vunpack.c.l.b16 %v241
      %v402 = vunpack.c.l.b16 %v242
      %v403 = vunpack.c.l.b16 %v243
      %v404 = vunpack.c.l.b16 %v244
      %v405 = vunpack.c.l.b16 %v245
      %v406 = vunpack.c.l.b16 %v246
      %v407 = vunpack.c.l.b16 %v247
      %v408 = vunpack.c.l.b16 %v248
      %v409 = vunpack.c.l.b16 %v249
      %v410 = vunpack.c.l.b16 %v250
      %v411 = vunpack.c.l.b16 %v251
      %v412 = vunpack.c.l.b16 %v252
      %v413 = vunpack.c.l.b16 %v253
      %v414 = vunpack.c.l.b16 %v254
      %v415 = vunpack.c.l.b16 %v255
      %v416 = vunpack.c.l.b16 %v256
      %v417 = vunpack.c.l.b16 %v257
      %v418 = vunpack.c.l.b16 %v258
      %v419 = vunpack.c.l.b16 %v259
      %v420 = vunpack.c.l.b16 %v260
      %v421 = vunpack.c.l.b16 %v261
      %v422 = vunpack.c.l.b16 %v262
      %v423 = vunpack.c.l.b16 %v263
      %v424 = vunpack.c.l.b16 %v264
      %v425 = vunpack.c.l.b16 %v265
      %v426 = vunpack.c.l.b16 %v266
      %v427 = vunpack.c.l.b16 %v267
      %v428 = vunpack.c.l.b16 %v268
      %v429 = vunpack.c.l.b16 %v269
      %v430 = vunpack.c.l.b16 %v270
      %v431 = vunpack.c.l.b16 %v271
      %v432 = vunpack.c.l.b16 %v272
      %v433 = vunpack.c.l.b16 %v273
      %v434 = vunpack.c.l.b16 %v274
      %v435 = vunpack.c.l.b16 %v275
      %v436 = vunpack.c.l.b16 %v276
      %v437 = vunpack.c.l.b16 %v277
      %v438 = vunpack.c.l.b16 %v278
      %v439 = vunpack.c.l.b16 %v279
      %v440 = vunpack.c.l.b16 %v280
      %v441 = vunpack.c.l.b16 %v281
      %v442 = vunpack.c.l.b16 %v282
      %v443 = vunpack.c.l.b16 %v283
      %v444 = vunpack.c.l.b16 %v284
      %v445 = vunpack.c.l.b16 %v285
      %v446 = vunpack.c.l.b16 %v286
      %v447 = vunpack.c.l.b16 %v287
      %v448 = vunpack.c.l.b16 %v288
      %v449 = vunpack.c.l.b16 %v289
      %v450 = vunpack.c.l.b16 %v290
      %v451 = vunpack.c.l.b16 %v291
      %v452 = vunpack.c.l.b16 %v292
      %v453 = vunpack.c.l.b16 %v293
      %v454 = vpack.c.b16 %v383, %v382
      %v455 = vpack.c.b16 %v385, %v384
      %v456 = vpack.c.b16 %v387, %v386
      %v457 = vpack.c.b16 %v389, %v388
      %v458 = vpack.c.b16 %v391, %v390
      %v459 = vpack.c.b16 %v393, %v392
      %v460 = vpack.c.b16 %v395, %v394
      %v461 = vpack.c.b16 %v397, %v396
      %v462 = vpack.c.b16 %v399, %v398
      %v463 = vpack.c.b16 %v401, %v400
      %v464 = vpack.c.b16 %v403, %v402
      %v465 = vpack.c.b16 %v405, %v404
      %v466 = vpack.c.b16 %v407, %v406
      %v467 = vpack.c.b16 %v409, %v408
      %v468 = vpack.c.b16 %v411, %v410
      %v469 = vpack.c.b16 %v413, %v412
      %v470 = vpack.c.b16 %v415, %v414
      %v471 = vpack.c.b16 %v417, %v416
      %v472 = vpack.c.b16 %v419, %v418
      %v473 = vpack.c.b16 %v421, %v420
      %v474 = vpack.c.b16 %v423, %v422
      %v475 = vpack.c.b16 %v425, %v424
      %v476 = vpack.c.b16 %v427, %v426
      %v477 = vpack.c.b16 %v429, %v428
      %v478 = vpack.c.b16 %v431, %v430
      %v479 = vpack.c.b16 %v433, %v432
      %v480 = vpack.c.b16 %v435, %v434
      %v481 = vpack.c.b16 %v437, %v436
      %v482 = vpack.c.b16 %v439, %v438
      %v483 = vpack.c.b16 %v441, %v440
      %v484 = vpack.c.b16 %v443, %v442
      %v485 = vpack.c.b16 %v445, %v444
      %v486 = vpack.c.b16 %v447, %v446
      %v487 = vpack.c.b16 %v449, %v448
      %v488 = vpack.c.b16 %v451, %v450
      %v489 = vpack.c.b16 %v453, %v452
      %vm526 = vcmask 523264
      %v527 = vsel %vm526, %v305, 0
      %529 = vmatpush.bf16.msra.mxu0 %v461
      %530 = vmatpush.bf16.msra.mxu0 %v460
      %531 = vmatpush.bf16.msra.mxu0 %v459
      %532 = vmatpush.bf16.msra.mxu0 %v458
      %533 = vmatpush.bf16.msra.mxu0 %v457
      %534 = vmatpush.bf16.msra.mxu0 %v456
      %535 = vmatpush.bf16.msra.mxu0 %v455
      %536 = vmatpush.bf16.msra.mxu0 %v454
      %537 = vmatmul.bf16.gmra.mxu0 %v301
      %v538 = vpop.f32.mrf.mxu0
      %v539 = vadd.f32 0.0, %v538
      %v540 = vpop.f32.mrf.mxu0
      %541 = vdwg.mxu0
      %542 = vmatpush.bf16.msra.mxu0 %v469
      %543 = vmatpush.bf16.msra.mxu0 %v468
      %544 = vmatpush.bf16.msra.mxu0 %v467
      %545 = vmatpush.bf16.msra.mxu0 %v466
      %546 = vmatpush.bf16.msra.mxu0 %v465
      %547 = vmatpush.bf16.msra.mxu0 %v464
      %548 = vmatpush.bf16.msra.mxu0 %v463
      %549 = vmatpush.bf16.msra.mxu0 %v462
      %550 = vmatmul.bf16.gmra.mxu0 %v302
      %v551 = vpop.f32.mrf.mxu0
      %v552 = vadd.f32 %v539, %v551
      %v553 = vpop.f32.mrf.mxu0
      %554 = vdwg.mxu0
      %555 = vmatpush.bf16.msra.mxu0 %v477
      %556 = vmatpush.bf16.msra.mxu0 %v476
      %557 = vmatpush.bf16.msra.mxu0 %v475
      %558 = vmatpush.bf16.msra.mxu0 %v474
      %559 = vmatpush.bf16.msra.mxu0 %v473
      %560 = vmatpush.bf16.msra.mxu0 %v472
      %561 = vmatpush.bf16.msra.mxu0 %v471
      %562 = vmatpush.bf16.msra.mxu0 %v470
      %563 = vmatmul.bf16.gmra.mxu0 %v303
      %v564 = vpop.f32.mrf.mxu0
      %v565 = vadd.f32 %v552, %v564
      %v566 = vpop.f32.mrf.mxu0
      %567 = vdwg.mxu0
      %568 = vmatpush.bf16.msra.mxu0 %v485
      %569 = vmatpush.bf16.msra.mxu0 %v484
      %570 = vmatpush.bf16.msra.mxu0 %v483
      %571 = vmatpush.bf16.msra.mxu0 %v482
      %572 = vmatpush.bf16.msra.mxu0 %v481
      %573 = vmatpush.bf16.msra.mxu0 %v480
      %574 = vmatpush.bf16.msra.mxu0 %v479
      %575 = vmatpush.bf16.msra.mxu0 %v478
      %576 = vmatmul.bf16.gmra.mxu0 %v304
      %v577 = vpop.f32.mrf.mxu0
      %v578 = vadd.f32 %v565, %v577
      %v579 = vpop.f32.mrf.mxu0
      %580 = vdwg.mxu0
      %581 = vmatpush.bf16.msra.mxu0 0
      %582 = vmatpush.bf16.msra.mxu0 0
      %583 = vmatpush.bf16.msra.mxu0 0
      %584 = vmatpush.bf16.msra.mxu0 0
      %585 = vmatpush.bf16.msra.mxu0 %v489
      %586 = vmatpush.bf16.msra.mxu0 %v488
      %587 = vmatpush.bf16.msra.mxu0 %v487
      %588 = vmatpush.bf16.msra.mxu0 %v486
      %589 = vmatmul.bf16.gmra.mxu0 %v527
      %v590 = vpop.f32.mrf.mxu0
      %v591 = vadd.f32 %v578, %v590
      %v592 = vpop.f32.mrf.mxu0
      %593 = vdwg.mxu0
      %s594 = scalar_lea.vmem %s217, 10
      %v595 = vld [vmem:[%s594] sm:$0xff]
      %v596 = vld [vmem:[%s594 + $0x8] sm:$0x3]
      %598 = vst [vmem:[#allocation1] ss:$4 sm:$0xff] %v595
      %s600 = scalar_lea.vmem [#allocation1], 32
      %601 = vst [vmem:[%s600] ss:$4 sm:$0xff] %v596
      %v602 = vld.sshfl [vmem:[#allocation1] sm:$0xff pattern:$0x73625140]
      %v603 = vld.sshfl [vmem:[#allocation1 + $0x8] sm:$0xff pattern:$0x73625140]
      %v604 = vld.sshfl [vmem:[#allocation1 + $0x10] sm:$0xff pattern:$0x73625140]
      %v605 = vld.sshfl [vmem:[#allocation1 + $0x18] sm:$0xff pattern:$0x73625140]
      %v606 = vld.sshfl [vmem:[#allocation1 + $0x20] sm:$0xff pattern:$0x73625140]
      %v611 = vsel %vm526, %v606, 0
      %613 = vmatpush.bf16.msra.mxu0 %v461
      %614 = vmatpush.bf16.msra.mxu0 %v460
      %615 = vmatpush.bf16.msra.mxu0 %v459
      %616 = vmatpush.bf16.msra.mxu0 %v458
      %617 = vmatpush.bf16.msra.mxu0 %v457
      %618 = vmatpush.bf16.msra.mxu0 %v456
      %619 = vmatpush.bf16.msra.mxu0 %v455
      %620 = vmatpush.bf16.msra.mxu0 %v454
      %621 = vmatmul.bf16.gmra.mxu0 %v602
      %v622 = vpop.f32.mrf.mxu0
      %v623 = vadd.f32 0.0, %v622
      %v624 = vpop.f32.mrf.mxu0
      %625 = vdwg.mxu0
      %626 = vmatpush.bf16.msra.mxu0 %v469
      %627 = vmatpush.bf16.msra.mxu0 %v468
      %628 = vmatpush.bf16.msra.mxu0 %v467
      %629 = vmatpush.bf16.msra.mxu0 %v466
      %630 = vmatpush.bf16.msra.mxu0 %v465
      %631 = vmatpush.bf16.msra.mxu0 %v464
      %632 = vmatpush.bf16.msra.mxu0 %v463
      %633 = vmatpush.bf16.msra.mxu0 %v462
      %634 = vmatmul.bf16.gmra.mxu0 %v603
      %v635 = vpop.f32.mrf.mxu0
      %v636 = vadd.f32 %v623, %v635
      %v637 = vpop.f32.mrf.mxu0
      %638 = vdwg.mxu0
      %639 = vmatpush.bf16.msra.mxu0 %v477
      %640 = vmatpush.bf16.msra.mxu0 %v476
      %641 = vmatpush.bf16.msra.mxu0 %v475
      %642 = vmatpush.bf16.msra.mxu0 %v474
      %643 = vmatpush.bf16.msra.mxu0 %v473
      %644 = vmatpush.bf16.msra.mxu0 %v472
      %645 = vmatpush.bf16.msra.mxu0 %v471
      %646 = vmatpush.bf16.msra.mxu0 %v470
      %647 = vmatmul.bf16.gmra.mxu0 %v604
      %v648 = vpop.f32.mrf.mxu0
      %v649 = vadd.f32 %v636, %v648
      %v650 = vpop.f32.mrf.mxu0
      %651 = vdwg.mxu0
      %652 = vmatpush.bf16.msra.mxu0 %v485
      %653 = vmatpush.bf16.msra.mxu0 %v484
      %654 = vmatpush.bf16.msra.mxu0 %v483
      %655 = vmatpush.bf16.msra.mxu0 %v482
      %656 = vmatpush.bf16.msra.mxu0 %v481
      %657 = vmatpush.bf16.msra.mxu0 %v480
      %658 = vmatpush.bf16.msra.mxu0 %v479
      %659 = vmatpush.bf16.msra.mxu0 %v478
      %660 = vmatmul.bf16.gmra.mxu0 %v605
      %v661 = vpop.f32.mrf.mxu0
      %v662 = vadd.f32 %v649, %v661
      %v663 = vpop.f32.mrf.mxu0
      %664 = vdwg.mxu0
      %665 = vmatpush.bf16.msra.mxu0 0
      %666 = vmatpush.bf16.msra.mxu0 0
      %667 = vmatpush.bf16.msra.mxu0 0
      %668 = vmatpush.bf16.msra.mxu0 0
      %669 = vmatpush.bf16.msra.mxu0 %v489
      %670 = vmatpush.bf16.msra.mxu0 %v488
      %671 = vmatpush.bf16.msra.mxu0 %v487
      %672 = vmatpush.bf16.msra.mxu0 %v486
      %673 = vmatmul.bf16.gmra.mxu0 %v611
      %v674 = vpop.f32.mrf.mxu0
      %v675 = vadd.f32 %v662, %v674
      %v676 = vpop.f32.mrf.mxu0
      %677 = vdwg.mxu0
      %v678 = vmax.f32 %v591, %v675
      %s679 = scalar_lea.vmem %s217, 20
      %v680 = vld [vmem:[%s679] sm:$0xff]
      %v681 = vld [vmem:[%s679 + $0x8] sm:$0x3]
      %683 = vst [vmem:[#allocation1] ss:$4 sm:$0xff] %v680
      %s685 = scalar_lea.vmem [#allocation1], 32
      %686 = vst [vmem:[%s685] ss:$4 sm:$0xff] %v681
      %v687 = vld.sshfl [vmem:[#allocation1] sm:$0xff pattern:$0x73625140]
      %v688 = vld.sshfl [vmem:[#allocation1 + $0x8] sm:$0xff pattern:$0x73625140]
      %v689 = vld.sshfl [vmem:[#allocation1 + $0x10] sm:$0xff pattern:$0x73625140]
      %v690 = vld.sshfl [vmem:[#allocation1 + $0x18] sm:$0xff pattern:$0x73625140]
      %v691 = vld.sshfl [vmem:[#allocation1 + $0x20] sm:$0xff pattern:$0x73625140]
      %v696 = vsel %vm526, %v691, 0
      %698 = vmatpush.bf16.msra.mxu0 %v461
      %699 = vmatpush.bf16.msra.mxu0 %v460
      %700 = vmatpush.bf16.msra.mxu0 %v459
      %701 = vmatpush.bf16.msra.mxu0 %v458
      %702 = vmatpush.bf16.msra.mxu0 %v457
      %703 = vmatpush.bf16.msra.mxu0 %v456
      %704 = vmatpush.bf16.msra.mxu0 %v455
      %705 = vmatpush.bf16.msra.mxu0 %v454
      %706 = vmatmul.bf16.gmra.mxu0 %v687
      %v707 = vpop.f32.mrf.mxu0
      %v708 = vadd.f32 0.0, %v707
      %v709 = vpop.f32.mrf.mxu0
      %710 = vdwg.mxu0
      %711 = vmatpush.bf16.msra.mxu0 %v469
      %712 = vmatpush.bf16.msra.mxu0 %v468
      %713 = vmatpush.bf16.msra.mxu0 %v467
      %714 = vmatpush.bf16.msra.mxu0 %v466
      %715 = vmatpush.bf16.msra.mxu0 %v465
      %716 = vmatpush.bf16.msra.mxu0 %v464
      %717 = vmatpush.bf16.msra.mxu0 %v463
      %718 = vmatpush.bf16.msra.mxu0 %v462
      %719 = vmatmul.bf16.gmra.mxu0 %v688
      %v720 = vpop.f32.mrf.mxu0
      %v721 = vadd.f32 %v708, %v720
      %v722 = vpop.f32.mrf.mxu0
      %723 = vdwg.mxu0
      %724 = vmatpush.bf16.msra.mxu0 %v477
      %725 = vmatpush.bf16.msra.mxu0 %v476
      %726 = vmatpush.bf16.msra.mxu0 %v475
      %727 = vmatpush.bf16.msra.mxu0 %v474
      %728 = vmatpush.bf16.msra.mxu0 %v473
      %729 = vmatpush.bf16.msra.mxu0 %v472
      %730 = vmatpush.bf16.msra.mxu0 %v471
      %731 = vmatpush.bf16.msra.mxu0 %v470
      %732 = vmatmul.bf16.gmra.mxu0 %v689
      %v733 = vpop.f32.mrf.mxu0
      %v734 = vadd.f32 %v721, %v733
      %v735 = vpop.f32.mrf.mxu0
      %736 = vdwg.mxu0
      %737 = vmatpush.bf16.msra.mxu0 %v485
      %738 = vmatpush.bf16.msra.mxu0 %v484
      %739 = vmatpush.bf16.msra.mxu0 %v483
      %740 = vmatpush.bf16.msra.mxu0 %v482
      %741 = vmatpush.bf16.msra.mxu0 %v481
      %742 = vmatpush.bf16.msra.mxu0 %v480
      %743 = vmatpush.bf16.msra.mxu0 %v479
      %744 = vmatpush.bf16.msra.mxu0 %v478
      %745 = vmatmul.bf16.gmra.mxu0 %v690
      %v746 = vpop.f32.mrf.mxu0
      %v747 = vadd.f32 %v734, %v746
      %v748 = vpop.f32.mrf.mxu0
      %749 = vdwg.mxu0
      %750 = vmatpush.bf16.msra.mxu0 0
      %751 = vmatpush.bf16.msra.mxu0 0
      %752 = vmatpush.bf16.msra.mxu0 0
      %753 = vmatpush.bf16.msra.mxu0 0
      %754 = vmatpush.bf16.msra.mxu0 %v489
      %755 = vmatpush.bf16.msra.mxu0 %v488
      %756 = vmatpush.bf16.msra.mxu0 %v487
      %757 = vmatpush.bf16.msra.mxu0 %v486
      %758 = vmatmul.bf16.gmra.mxu0 %v696
      %v759 = vpop.f32.mrf.mxu0
      %v760 = vadd.f32 %v747, %v759
      %v761 = vpop.f32.mrf.mxu0
      %762 = vdwg.mxu0
      %v763 = vmax.f32 %v678, %v760
      %s764 = scalar_lea.vmem %s217, 30
      %v765 = vld [vmem:[%s764] sm:$0xff]
      %v766 = vld [vmem:[%s764 + $0x8] sm:$0x3]
      %768 = vst [vmem:[#allocation1] ss:$4 sm:$0xff] %v765
      %s770 = scalar_lea.vmem [#allocation1], 32
      %771 = vst [vmem:[%s770] ss:$4 sm:$0xff] %v766
      %v772 = vld.sshfl [vmem:[#allocation1] sm:$0xff pattern:$0x73625140]
      %v773 = vld.sshfl [vmem:[#allocation1 + $0x8] sm:$0xff pattern:$0x73625140]
      %v774 = vld.sshfl [vmem:[#allocation1 + $0x10] sm:$0xff pattern:$0x73625140]
      %v775 = vld.sshfl [vmem:[#allocation1 + $0x18] sm:$0xff pattern:$0x73625140]
      %v776 = vld.sshfl [vmem:[#allocation1 + $0x20] sm:$0xff pattern:$0x73625140]
      %v781 = vsel %vm526, %v776, 0
      %783 = vmatpush.bf16.msra.mxu0 %v461
      %784 = vmatpush.bf16.msra.mxu0 %v460
      %785 = vmatpush.bf16.msra.mxu0 %v459
      %786 = vmatpush.bf16.msra.mxu0 %v458
      %787 = vmatpush.bf16.msra.mxu0 %v457
      %788 = vmatpush.bf16.msra.mxu0 %v456
      %789 = vmatpush.bf16.msra.mxu0 %v455
      %790 = vmatpush.bf16.msra.mxu0 %v454
      %791 = vmatmul.bf16.gmra.mxu0 %v772
      %v792 = vpop.f32.mrf.mxu0
      %v793 = vadd.f32 0.0, %v792
      %v794 = vpop.f32.mrf.mxu0
      %795 = vdwg.mxu0
      %796 = vmatpush.bf16.msra.mxu0 %v469
      %797 = vmatpush.bf16.msra.mxu0 %v468
      %798 = vmatpush.bf16.msra.mxu0 %v467
      %799 = vmatpush.bf16.msra.mxu0 %v466
      %800 = vmatpush.bf16.msra.mxu0 %v465
      %801 = vmatpush.bf16.msra.mxu0 %v464
      %802 = vmatpush.bf16.msra.mxu0 %v463
      %803 = vmatpush.bf16.msra.mxu0 %v462
      %804 = vmatmul.bf16.gmra.mxu0 %v773
      %v805 = vpop.f32.mrf.mxu0
      %v806 = vadd.f32 %v793, %v805
      %v807 = vpop.f32.mrf.mxu0
      %808 = vdwg.mxu0
      %809 = vmatpush.bf16.msra.mxu0 %v477
      %810 = vmatpush.bf16.msra.mxu0 %v476
      %811 = vmatpush.bf16.msra.mxu0 %v475
      %812 = vmatpush.bf16.msra.mxu0 %v474
      %813 = vmatpush.bf16.msra.mxu0 %v473
      %814 = vmatpush.bf16.msra.mxu0 %v472
      %815 = vmatpush.bf16.msra.mxu0 %v471
      %816 = vmatpush.bf16.msra.mxu0 %v470
      %817 = vmatmul.bf16.gmra.mxu0 %v774
      %v818 = vpop.f32.mrf.mxu0
      %v819 = vadd.f32 %v806, %v818
      %v820 = vpop.f32.mrf.mxu0
      %821 = vdwg.mxu0
      %822 = vmatpush.bf16.msra.mxu0 %v485
      %823 = vmatpush.bf16.msra.mxu0 %v484
      %824 = vmatpush.bf16.msra.mxu0 %v483
      %825 = vmatpush.bf16.msra.mxu0 %v482
      %826 = vmatpush.bf16.msra.mxu0 %v481
      %827 = vmatpush.bf16.msra.mxu0 %v480
      %828 = vmatpush.bf16.msra.mxu0 %v479
      %829 = vmatpush.bf16.msra.mxu0 %v478
      %830 = vmatmul.bf16.gmra.mxu0 %v775
      %v831 = vpop.f32.mrf.mxu0
      %v832 = vadd.f32 %v819, %v831
      %v833 = vpop.f32.mrf.mxu0
      %834 = vdwg.mxu0
      %835 = vmatpush.bf16.msra.mxu0 0
      %836 = vmatpush.bf16.msra.mxu0 0
      %837 = vmatpush.bf16.msra.mxu0 0
      %838 = vmatpush.bf16.msra.mxu0 0
      %839 = vmatpush.bf16.msra.mxu0 %v489
      %840 = vmatpush.bf16.msra.mxu0 %v488
      %841 = vmatpush.bf16.msra.mxu0 %v487
      %842 = vmatpush.bf16.msra.mxu0 %v486
      %843 = vmatmul.bf16.gmra.mxu0 %v781
      %v844 = vpop.f32.mrf.mxu0
      %v845 = vadd.f32 %v832, %v844
      %v846 = vpop.f32.mrf.mxu0
      %847 = vdwg.mxu0
      %v848 = vmax.f32 %v763, %v845
      %s849 = scalar_lea.vmem %s217, 40
      %v850 = vld [vmem:[%s849] sm:$0xff]
      %v851 = vld [vmem:[%s849 + $0x8] sm:$0x3]
      %853 = vst [vmem:[#allocation1] ss:$4 sm:$0xff] %v850
      %s855 = scalar_lea.vmem [#allocation1], 32
      %856 = vst [vmem:[%s855] ss:$4 sm:$0xff] %v851
      %v857 = vld.sshfl [vmem:[#allocation1] sm:$0xff pattern:$0x73625140]
      %v858 = vld.sshfl [vmem:[#allocation1 + $0x8] sm:$0xff pattern:$0x73625140]
      %v859 = vld.sshfl [vmem:[#allocation1 + $0x10] sm:$0xff pattern:$0x73625140]
      %v860 = vld.sshfl [vmem:[#allocation1 + $0x18] sm:$0xff pattern:$0x73625140]
      %v861 = vld.sshfl [vmem:[#allocation1 + $0x20] sm:$0xff pattern:$0x73625140]
      %v866 = vsel %vm526, %v861, 0
      %868 = vmatpush.bf16.msra.mxu0 %v461
      %869 = vmatpush.bf16.msra.mxu0 %v460
      %870 = vmatpush.bf16.msra.mxu0 %v459
      %871 = vmatpush.bf16.msra.mxu0 %v458
      %872 = vmatpush.bf16.msra.mxu0 %v457
      %873 = vmatpush.bf16.msra.mxu0 %v456
      %874 = vmatpush.bf16.msra.mxu0 %v455
      %875 = vmatpush.bf16.msra.mxu0 %v454
      %876 = vmatmul.bf16.gmra.mxu0 %v857
      %v877 = vpop.f32.mrf.mxu0
      %v878 = vadd.f32 0.0, %v877
      %v879 = vpop.f32.mrf.mxu0
      %880 = vdwg.mxu0
      %881 = vmatpush.bf16.msra.mxu0 %v469
      %882 = vmatpush.bf16.msra.mxu0 %v468
      %883 = vmatpush.bf16.msra.mxu0 %v467
      %884 = vmatpush.bf16.msra.mxu0 %v466
      %885 = vmatpush.bf16.msra.mxu0 %v465
      %886 = vmatpush.bf16.msra.mxu0 %v464
      %887 = vmatpush.bf16.msra.mxu0 %v463
      %888 = vmatpush.bf16.msra.mxu0 %v462
      %889 = vmatmul.bf16.gmra.mxu0 %v858
      %v890 = vpop.f32.mrf.mxu0
      %v891 = vadd.f32 %v878, %v890
      %v892 = vpop.f32.mrf.mxu0
      %893 = vdwg.mxu0
      %894 = vmatpush.bf16.msra.mxu0 %v477
      %895 = vmatpush.bf16.msra.mxu0 %v476
      %896 = vmatpush.bf16.msra.mxu0 %v475
      %897 = vmatpush.bf16.msra.mxu0 %v474
      %898 = vmatpush.bf16.msra.mxu0 %v473
      %899 = vmatpush.bf16.msra.mxu0 %v472
      %900 = vmatpush.bf16.msra.mxu0 %v471
      %901 = vmatpush.bf16.msra.mxu0 %v470
      %902 = vmatmul.bf16.gmra.mxu0 %v859
      %v903 = vpop.f32.mrf.mxu0
      %v904 = vadd.f32 %v891, %v903
      %v905 = vpop.f32.mrf.mxu0
      %906 = vdwg.mxu0
      %907 = vmatpush.bf16.msra.mxu0 %v485
      %908 = vmatpush.bf16.msra.mxu0 %v484
      %909 = vmatpush.bf16.msra.mxu0 %v483
      %910 = vmatpush.bf16.msra.mxu0 %v482
      %911 = vmatpush.bf16.msra.mxu0 %v481
      %912 = vmatpush.bf16.msra.mxu0 %v480
      %913 = vmatpush.bf16.msra.mxu0 %v479
      %914 = vmatpush.bf16.msra.mxu0 %v478
      %915 = vmatmul.bf16.gmra.mxu0 %v860
      %v916 = vpop.f32.mrf.mxu0
      %v917 = vadd.f32 %v904, %v916
      %v918 = vpop.f32.mrf.mxu0
      %919 = vdwg.mxu0
      %920 = vmatpush.bf16.msra.mxu0 0
      %921 = vmatpush.bf16.msra.mxu0 0
      %922 = vmatpush.bf16.msra.mxu0 0
      %923 = vmatpush.bf16.msra.mxu0 0
      %924 = vmatpush.bf16.msra.mxu0 %v489
      %925 = vmatpush.bf16.msra.mxu0 %v488
      %926 = vmatpush.bf16.msra.mxu0 %v487
      %927 = vmatpush.bf16.msra.mxu0 %v486
      %928 = vmatmul.bf16.gmra.mxu0 %v866
      %v929 = vpop.f32.mrf.mxu0
      %v930 = vadd.f32 %v917, %v929
      %v931 = vpop.f32.mrf.mxu0
      %932 = vdwg.mxu0
      %v933 = vmax.f32 %v848, %v930
      %s934 = scalar_lea.vmem %s217, 50
      %v935 = vld [vmem:[%s934] sm:$0xff]
      %v936 = vld [vmem:[%s934 + $0x8] sm:$0x3]
      %938 = vst [vmem:[#allocation1] ss:$4 sm:$0xff] %v935
      %s940 = scalar_lea.vmem [#allocation1], 32
      %941 = vst [vmem:[%s940] ss:$4 sm:$0xff] %v936
      %v942 = vld.sshfl [vmem:[#allocation1] sm:$0xff pattern:$0x73625140]
      %v943 = vld.sshfl [vmem:[#allocation1 + $0x8] sm:$0xff pattern:$0x73625140]
      %v944 = vld.sshfl [vmem:[#allocation1 + $0x10] sm:$0xff pattern:$0x73625140]
      %v945 = vld.sshfl [vmem:[#allocation1 + $0x18] sm:$0xff pattern:$0x73625140]
      %v946 = vld.sshfl [vmem:[#allocation1 + $0x20] sm:$0xff pattern:$0x73625140]
      %v951 = vsel %vm526, %v946, 0
      %953 = vmatpush.bf16.msra.mxu0 %v461
      %954 = vmatpush.bf16.msra.mxu0 %v460
      %955 = vmatpush.bf16.msra.mxu0 %v459
      %956 = vmatpush.bf16.msra.mxu0 %v458
      %957 = vmatpush.bf16.msra.mxu0 %v457
      %958 = vmatpush.bf16.msra.mxu0 %v456
      %959 = vmatpush.bf16.msra.mxu0 %v455
      %960 = vmatpush.bf16.msra.mxu0 %v454
      %961 = vmatmul.bf16.gmra.mxu0 %v942
      %v962 = vpop.f32.mrf.mxu0
      %v963 = vadd.f32 0.0, %v962
      %v964 = vpop.f32.mrf.mxu0
      %965 = vdwg.mxu0
      %966 = vmatpush.bf16.msra.mxu0 %v469
      %967 = vmatpush.bf16.msra.mxu0 %v468
      %968 = vmatpush.bf16.msra.mxu0 %v467
      %969 = vmatpush.bf16.msra.mxu0 %v466
      %970 = vmatpush.bf16.msra.mxu0 %v465
      %971 = vmatpush.bf16.msra.mxu0 %v464
      %972 = vmatpush.bf16.msra.mxu0 %v463
      %973 = vmatpush.bf16.msra.mxu0 %v462
      %974 = vmatmul.bf16.gmra.mxu0 %v943
      %v975 = vpop.f32.mrf.mxu0
      %v976 = vadd.f32 %v963, %v975
      %v977 = vpop.f32.mrf.mxu0
      %978 = vdwg.mxu0
      %979 = vmatpush.bf16.msra.mxu0 %v477
      %980 = vmatpush.bf16.msra.mxu0 %v476
      %981 = vmatpush.bf16.msra.mxu0 %v475
      %982 = vmatpush.bf16.msra.mxu0 %v474
      %983 = vmatpush.bf16.msra.mxu0 %v473
      %984 = vmatpush.bf16.msra.mxu0 %v472
      %985 = vmatpush.bf16.msra.mxu0 %v471
      %986 = vmatpush.bf16.msra.mxu0 %v470
      %987 = vmatmul.bf16.gmra.mxu0 %v944
      %v988 = vpop.f32.mrf.mxu0
      %v989 = vadd.f32 %v976, %v988
      %v990 = vpop.f32.mrf.mxu0
      %991 = vdwg.mxu0
      %992 = vmatpush.bf16.msra.mxu0 %v485
      %993 = vmatpush.bf16.msra.mxu0 %v484
      %994 = vmatpush.bf16.msra.mxu0 %v483
      %995 = vmatpush.bf16.msra.mxu0 %v482
      %996 = vmatpush.bf16.msra.mxu0 %v481
      %997 = vmatpush.bf16.msra.mxu0 %v480
      %998 = vmatpush.bf16.msra.mxu0 %v479
      %999 = vmatpush.bf16.msra.mxu0 %v478
      %1000 = vmatmul.bf16.gmra.mxu0 %v945
      %v1001 = vpop.f32.mrf.mxu0
      %v1002 = vadd.f32 %v989, %v1001
      %v1003 = vpop.f32.mrf.mxu0
      %1004 = vdwg.mxu0
      %1005 = vmatpush.bf16.msra.mxu0 0
      %1006 = vmatpush.bf16.msra.mxu0 0
      %1007 = vmatpush.bf16.msra.mxu0 0
      %1008 = vmatpush.bf16.msra.mxu0 0
      %1009 = vmatpush.bf16.msra.mxu0 %v489
      %1010 = vmatpush.bf16.msra.mxu0 %v488
      %1011 = vmatpush.bf16.msra.mxu0 %v487
      %1012 = vmatpush.bf16.msra.mxu0 %v486
      %1013 = vmatmul.bf16.gmra.mxu0 %v951
      %v1014 = vpop.f32.mrf.mxu0
      %v1015 = vadd.f32 %v1002, %v1014
      %v1016 = vpop.f32.mrf.mxu0
      %1017 = vdwg.mxu0
      %v1018 = vmax.f32 %v933, %v1015
      %s1019 = scalar_lea.vmem %s217, 60
      %v1020 = vld [vmem:[%s1019] sm:$0xff]
      %v1021 = vld [vmem:[%s1019 + $0x8] sm:$0x3]
      %1023 = vst [vmem:[#allocation1] ss:$4 sm:$0xff] %v1020
      %s1025 = scalar_lea.vmem [#allocation1], 32
      %1026 = vst [vmem:[%s1025] ss:$4 sm:$0xff] %v1021
      %v1027 = vld.sshfl [vmem:[#allocation1] sm:$0xff pattern:$0x73625140]
      %v1028 = vld.sshfl [vmem:[#allocation1 + $0x8] sm:$0xff pattern:$0x73625140]
      %v1029 = vld.sshfl [vmem:[#allocation1 + $0x10] sm:$0xff pattern:$0x73625140]
      %v1030 = vld.sshfl [vmem:[#allocation1 + $0x18] sm:$0xff pattern:$0x73625140]
      %v1031 = vld.sshfl [vmem:[#allocation1 + $0x20] sm:$0xff pattern:$0x73625140]
      %v1036 = vsel %vm526, %v1031, 0
      %1038 = vmatpush.bf16.msra.mxu0 %v461
      %1039 = vmatpush.bf16.msra.mxu0 %v460
      %1040 = vmatpush.bf16.msra.mxu0 %v459
      %1041 = vmatpush.bf16.msra.mxu0 %v458
      %1042 = vmatpush.bf16.msra.mxu0 %v457
      %1043 = vmatpush.bf16.msra.mxu0 %v456
      %1044 = vmatpush.bf16.msra.mxu0 %v455
      %1045 = vmatpush.bf16.msra.mxu0 %v454
      %1046 = vmatmul.bf16.gmra.mxu0 %v1027
      %v1047 = vpop.f32.mrf.mxu0
      %v1048 = vadd.f32 0.0, %v1047
      %v1049 = vpop.f32.mrf.mxu0
      %1050 = vdwg.mxu0
      %1051 = vmatpush.bf16.msra.mxu0 %v469
      %1052 = vmatpush.bf16.msra.mxu0 %v468
      %1053 = vmatpush.bf16.msra.mxu0 %v467
      %1054 = vmatpush.bf16.msra.mxu0 %v466
      %1055 = vmatpush.bf16.msra.mxu0 %v465
      %1056 = vmatpush.bf16.msra.mxu0 %v464
      %1057 = vmatpush.bf16.msra.mxu0 %v463
      %1058 = vmatpush.bf16.msra.mxu0 %v462
      %1059 = vmatmul.bf16.gmra.mxu0 %v1028
      %v1060 = vpop.f32.mrf.mxu0
      %v1061 = vadd.f32 %v1048, %v1060
      %v1062 = vpop.f32.mrf.mxu0
      %1063 = vdwg.mxu0
      %1064 = vmatpush.bf16.msra.mxu0 %v477
      %1065 = vmatpush.bf16.msra.mxu0 %v476
      %1066 = vmatpush.bf16.msra.mxu0 %v475
      %1067 = vmatpush.bf16.msra.mxu0 %v474
      %1068 = vmatpush.bf16.msra.mxu0 %v473
      %1069 = vmatpush.bf16.msra.mxu0 %v472
      %1070 = vmatpush.bf16.msra.mxu0 %v471
      %1071 = vmatpush.bf16.msra.mxu0 %v470
      %1072 = vmatmul.bf16.gmra.mxu0 %v1029
      %v1073 = vpop.f32.mrf.mxu0
      %v1074 = vadd.f32 %v1061, %v1073
      %v1075 = vpop.f32.mrf.mxu0
      %1076 = vdwg.mxu0
      %1077 = vmatpush.bf16.msra.mxu0 %v485
      %1078 = vmatpush.bf16.msra.mxu0 %v484
      %1079 = vmatpush.bf16.msra.mxu0 %v483
      %1080 = vmatpush.bf16.msra.mxu0 %v482
      %1081 = vmatpush.bf16.msra.mxu0 %v481
      %1082 = vmatpush.bf16.msra.mxu0 %v480
      %1083 = vmatpush.bf16.msra.mxu0 %v479
      %1084 = vmatpush.bf16.msra.mxu0 %v478
      %1085 = vmatmul.bf16.gmra.mxu0 %v1030
      %v1086 = vpop.f32.mrf.mxu0
      %v1087 = vadd.f32 %v1074, %v1086
      %v1088 = vpop.f32.mrf.mxu0
      %1089 = vdwg.mxu0
      %1090 = vmatpush.bf16.msra.mxu0 0
      %1091 = vmatpush.bf16.msra.mxu0 0
      %1092 = vmatpush.bf16.msra.mxu0 0
      %1093 = vmatpush.bf16.msra.mxu0 0
      %1094 = vmatpush.bf16.msra.mxu0 %v489
      %1095 = vmatpush.bf16.msra.mxu0 %v488
      %1096 = vmatpush.bf16.msra.mxu0 %v487
      %1097 = vmatpush.bf16.msra.mxu0 %v486
      %1098 = vmatmul.bf16.gmra.mxu0 %v1036
      %v1099 = vpop.f32.mrf.mxu0
      %v1100 = vadd.f32 %v1087, %v1099
      %v1101 = vpop.f32.mrf.mxu0
      %1102 = vdwg.mxu0
      %v1103 = vmax.f32 %v1018, %v1100
      %s1104 = scalar_lea.vmem %s217, 70
      %v1105 = vld [vmem:[%s1104] sm:$0xff]
      %v1106 = vld [vmem:[%s1104 + $0x8] sm:$0x3]
      %1108 = vst [vmem:[#allocation1] ss:$4 sm:$0xff] %v1105
      %s1110 = scalar_lea.vmem [#allocation1], 32
      %1111 = vst [vmem:[%s1110] ss:$4 sm:$0xff] %v1106
      %v1112 = vld.sshfl [vmem:[#allocation1] sm:$0xff pattern:$0x73625140]
      %v1113 = vld.sshfl [vmem:[#allocation1 + $0x8] sm:$0xff pattern:$0x73625140]
      %v1114 = vld.sshfl [vmem:[#allocation1 + $0x10] sm:$0xff pattern:$0x73625140]
      %v1115 = vld.sshfl [vmem:[#allocation1 + $0x18] sm:$0xff pattern:$0x73625140]
      %v1116 = vld.sshfl [vmem:[#allocation1 + $0x20] sm:$0xff pattern:$0x73625140]
      %v1121 = vsel %vm526, %v1116, 0
      %1123 = vmatpush.bf16.msra.mxu0 %v461
      %1124 = vmatpush.bf16.msra.mxu0 %v460
      %1125 = vmatpush.bf16.msra.mxu0 %v459
      %1126 = vmatpush.bf16.msra.mxu0 %v458
      %1127 = vmatpush.bf16.msra.mxu0 %v457
      %1128 = vmatpush.bf16.msra.mxu0 %v456
      %1129 = vmatpush.bf16.msra.mxu0 %v455
      %1130 = vmatpush.bf16.msra.mxu0 %v454
      %1131 = vmatmul.bf16.gmra.mxu0 %v1112
      %v1132 = vpop.f32.mrf.mxu0
      %v1133 = vadd.f32 0.0, %v1132
      %v1134 = vpop.f32.mrf.mxu0
      %1135 = vdwg.mxu0
      %1136 = vmatpush.bf16.msra.mxu0 %v469
      %1137 = vmatpush.bf16.msra.mxu0 %v468
      %1138 = vmatpush.bf16.msra.mxu0 %v467
      %1139 = vmatpush.bf16.msra.mxu0 %v466
      %1140 = vmatpush.bf16.msra.mxu0 %v465
      %1141 = vmatpush.bf16.msra.mxu0 %v464
      %1142 = vmatpush.bf16.msra.mxu0 %v463
      %1143 = vmatpush.bf16.msra.mxu0 %v462
      %1144 = vmatmul.bf16.gmra.mxu0 %v1113
      %v1145 = vpop.f32.mrf.mxu0
      %v1146 = vadd.f32 %v1133, %v1145
      %v1147 = vpop.f32.mrf.mxu0
      %1148 = vdwg.mxu0
      %1149 = vmatpush.bf16.msra.mxu0 %v477
      %1150 = vmatpush.bf16.msra.mxu0 %v476
      %1151 = vmatpush.bf16.msra.mxu0 %v475
      %1152 = vmatpush.bf16.msra.mxu0 %v474
      %1153 = vmatpush.bf16.msra.mxu0 %v473
      %1154 = vmatpush.bf16.msra.mxu0 %v472
      %1155 = vmatpush.bf16.msra.mxu0 %v471
      %1156 = vmatpush.bf16.msra.mxu0 %v470
      %1157 = vmatmul.bf16.gmra.mxu0 %v1114
      %v1158 = vpop.f32.mrf.mxu0
      %v1159 = vadd.f32 %v1146, %v1158
      %v1160 = vpop.f32.mrf.mxu0
      %1161 = vdwg.mxu0
      %1162 = vmatpush.bf16.msra.mxu0 %v485
      %1163 = vmatpush.bf16.msra.mxu0 %v484
      %1164 = vmatpush.bf16.msra.mxu0 %v483
      %1165 = vmatpush.bf16.msra.mxu0 %v482
      %1166 = vmatpush.bf16.msra.mxu0 %v481
      %1167 = vmatpush.bf16.msra.mxu0 %v480
      %1168 = vmatpush.bf16.msra.mxu0 %v479
      %1169 = vmatpush.bf16.msra.mxu0 %v478
      %1170 = vmatmul.bf16.gmra.mxu0 %v1115
      %v1171 = vpop.f32.mrf.mxu0
      %v1172 = vadd.f32 %v1159, %v1171
      %v1173 = vpop.f32.mrf.mxu0
      %1174 = vdwg.mxu0
      %1175 = vmatpush.bf16.msra.mxu0 0
      %1176 = vmatpush.bf16.msra.mxu0 0
      %1177 = vmatpush.bf16.msra.mxu0 0
      %1178 = vmatpush.bf16.msra.mxu0 0
      %1179 = vmatpush.bf16.msra.mxu0 %v489
      %1180 = vmatpush.bf16.msra.mxu0 %v488
      %1181 = vmatpush.bf16.msra.mxu0 %v487
      %1182 = vmatpush.bf16.msra.mxu0 %v486
      %1183 = vmatmul.bf16.gmra.mxu0 %v1121
      %v1184 = vpop.f32.mrf.mxu0
      %v1185 = vadd.f32 %v1172, %v1184
      %v1186 = vpop.f32.mrf.mxu0
      %1187 = vdwg.mxu0
      %v1188 = vmax.f32 %v1103, %v1185
      %s1189 = scalar_lea.vmem %s217, 80
      %v1190 = vld [vmem:[%s1189] sm:$0xff]
      %v1191 = vld [vmem:[%s1189 + $0x8] sm:$0x3]
      %1193 = vst [vmem:[#allocation1] ss:$4 sm:$0xff] %v1190
      %s1195 = scalar_lea.vmem [#allocation1], 32
      %1196 = vst [vmem:[%s1195] ss:$4 sm:$0xff] %v1191
      %v1197 = vld.sshfl [vmem:[#allocation1] sm:$0xff pattern:$0x73625140]
      %v1198 = vld.sshfl [vmem:[#allocation1 + $0x8] sm:$0xff pattern:$0x73625140]
      %v1199 = vld.sshfl [vmem:[#allocation1 + $0x10] sm:$0xff pattern:$0x73625140]
      %v1200 = vld.sshfl [vmem:[#allocation1 + $0x18] sm:$0xff pattern:$0x73625140]
      %v1201 = vld.sshfl [vmem:[#allocation1 + $0x20] sm:$0xff pattern:$0x73625140]
      %v1206 = vsel %vm526, %v1201, 0
      %1208 = vmatpush.bf16.msra.mxu0 %v461
      %1209 = vmatpush.bf16.msra.mxu0 %v460
      %1210 = vmatpush.bf16.msra.mxu0 %v459
      %1211 = vmatpush.bf16.msra.mxu0 %v458
      %1212 = vmatpush.bf16.msra.mxu0 %v457
      %1213 = vmatpush.bf16.msra.mxu0 %v456
      %1214 = vmatpush.bf16.msra.mxu0 %v455
      %1215 = vmatpush.bf16.msra.mxu0 %v454
      %1216 = vmatmul.bf16.gmra.mxu0 %v1197
      %v1217 = vpop.f32.mrf.mxu0
      %v1218 = vadd.f32 0.0, %v1217
      %v1219 = vpop.f32.mrf.mxu0
      %1220 = vdwg.mxu0
      %1221 = vmatpush.bf16.msra.mxu0 %v469
      %1222 = vmatpush.bf16.msra.mxu0 %v468
      %1223 = vmatpush.bf16.msra.mxu0 %v467
      %1224 = vmatpush.bf16.msra.mxu0 %v466
      %1225 = vmatpush.bf16.msra.mxu0 %v465
      %1226 = vmatpush.bf16.msra.mxu0 %v464
      %1227 = vmatpush.bf16.msra.mxu0 %v463
      %1228 = vmatpush.bf16.msra.mxu0 %v462
      %1229 = vmatmul.bf16.gmra.mxu0 %v1198
      %v1230 = vpop.f32.mrf.mxu0
      %v1231 = vadd.f32 %v1218, %v1230
      %v1232 = vpop.f32.mrf.mxu0
      %1233 = vdwg.mxu0
      %1234 = vmatpush.bf16.msra.mxu0 %v477
      %1235 = vmatpush.bf16.msra.mxu0 %v476
      %1236 = vmatpush.bf16.msra.mxu0 %v475
      %1237 = vmatpush.bf16.msra.mxu0 %v474
      %1238 = vmatpush.bf16.msra.mxu0 %v473
      %1239 = vmatpush.bf16.msra.mxu0 %v472
      %1240 = vmatpush.bf16.msra.mxu0 %v471
      %1241 = vmatpush.bf16.msra.mxu0 %v470
      %1242 = vmatmul.bf16.gmra.mxu0 %v1199
      %v1243 = vpop.f32.mrf.mxu0
      %v1244 = vadd.f32 %v1231, %v1243
      %v1245 = vpop.f32.mrf.mxu0
      %1246 = vdwg.mxu0
      %1247 = vmatpush.bf16.msra.mxu0 %v485
      %1248 = vmatpush.bf16.msra.mxu0 %v484
      %1249 = vmatpush.bf16.msra.mxu0 %v483
      %1250 = vmatpush.bf16.msra.mxu0 %v482
      %1251 = vmatpush.bf16.msra.mxu0 %v481
      %1252 = vmatpush.bf16.msra.mxu0 %v480
      %1253 = vmatpush.bf16.msra.mxu0 %v479
      %1254 = vmatpush.bf16.msra.mxu0 %v478
      %1255 = vmatmul.bf16.gmra.mxu0 %v1200
      %v1256 = vpop.f32.mrf.mxu0
      %v1257 = vadd.f32 %v1244, %v1256
      %v1258 = vpop.f32.mrf.mxu0
      %1259 = vdwg.mxu0
      %1260 = vmatpush.bf16.msra.mxu0 0
      %1261 = vmatpush.bf16.msra.mxu0 0
      %1262 = vmatpush.bf16.msra.mxu0 0
      %1263 = vmatpush.bf16.msra.mxu0 0
      %1264 = vmatpush.bf16.msra.mxu0 %v489
      %1265 = vmatpush.bf16.msra.mxu0 %v488
      %1266 = vmatpush.bf16.msra.mxu0 %v487
      %1267 = vmatpush.bf16.msra.mxu0 %v486
      %1268 = vmatmul.bf16.gmra.mxu0 %v1206
      %v1269 = vpop.f32.mrf.mxu0
      %v1270 = vadd.f32 %v1257, %v1269
      %v1271 = vpop.f32.mrf.mxu0
      %1272 = vdwg.mxu0
      %v1273 = vmax.f32 %v1188, %v1270
      %v1274 = vld [vmem:[%s2] sm:$0x1]
      %v1276 = vperm.slane %v1274, 0
      %v1278 = vadd.f32 %v1273, %v1276
      %v1279 = vmax.f32 %v1278, 0.0
      %v1280 = vld [vmem:[%s3] sm:$0xff]
      %v1281 = vld [vmem:[%s3 + $0x8] sm:$0xff]
      %v1282 = vld [vmem:[%s3 + $0x10] sm:$0xff]
      %v1283 = vld [vmem:[%s3 + $0x18] sm:$0xff]
      %v1284 = vld [vmem:[%s3 + $0x20] sm:$0xff]
      %v1285 = vld [vmem:[%s3 + $0x28] sm:$0xff]
      %v1286 = vld [vmem:[%s3 + $0x30] sm:$0xff]
      %v1287 = vld [vmem:[%s3 + $0x38] sm:$0xff]
      %v1288 = vld [vmem:[%s3 + $0x40] sm:$0xff]
      %v1289 = vld [vmem:[%s3 + $0x48] sm:$0xff]
      %v1290 = vld [vmem:[%s3 + $0x50] sm:$0xff]
      %v1291 = vld [vmem:[%s3 + $0x58] sm:$0xff]
      %v1292 = vld [vmem:[%s3 + $0x60] sm:$0xff]
      %v1293 = vld [vmem:[%s3 + $0x68] sm:$0xff]
      %v1294 = vld [vmem:[%s3 + $0x70] sm:$0xff]
      %v1295 = vld [vmem:[%s3 + $0x78] sm:$0xff]
      %s1296 = scalar_lea.vmem %s3, 128
      %v1297 = vld [vmem:[%s1296] sm:$0xff]
      %v1298 = vld [vmem:[%s1296 + $0x8] sm:$0xff]
      %v1299 = vld [vmem:[%s1296 + $0x10] sm:$0xff]
      %v1300 = vld [vmem:[%s1296 + $0x18] sm:$0xff]
      %v1301 = vld [vmem:[%s1296 + $0x20] sm:$0xff]
      %v1302 = vld [vmem:[%s1296 + $0x28] sm:$0xff]
      %v1303 = vld [vmem:[%s1296 + $0x30] sm:$0xff]
      %v1304 = vld [vmem:[%s1296 + $0x38] sm:$0xff]
      %v1305 = vld [vmem:[%s1296 + $0x40] sm:$0xff]
      %v1306 = vld [vmem:[%s1296 + $0x48] sm:$0xff]
      %v1307 = vld [vmem:[%s1296 + $0x50] sm:$0xff]
      %v1308 = vld [vmem:[%s1296 + $0x58] sm:$0xff]
      %v1309 = vld [vmem:[%s1296 + $0x60] sm:$0xff]
      %v1310 = vld [vmem:[%s1296 + $0x68] sm:$0xff]
      %v1311 = vld [vmem:[%s1296 + $0x70] sm:$0xff]
      %v1312 = vld [vmem:[%s1296 + $0x78] sm:$0xff]
      %v1314 = vrot.slane %v1279, 1
      %1316 = vmatpush.msra.mxu0 %v1312
      %1317 = vmatpush.msra.mxu0 %v1311
      %1318 = vmatpush.msra.mxu0 %v1310
      %1319 = vmatpush.msra.mxu0 %v1309
      %1320 = vmatpush.msra.mxu0 %v1308
      %1321 = vmatpush.msra.mxu0 %v1307
      %1322 = vmatpush.msra.mxu0 %v1306
      %1323 = vmatpush.msra.mxu0 %v1305
      %1324 = vmatpush.msra.mxu0 %v1304
      %1325 = vmatpush.msra.mxu0 %v1303
      %1326 = vmatpush.msra.mxu0 %v1302
      %1327 = vmatpush.msra.mxu0 %v1301
      %1328 = vmatpush.msra.mxu0 %v1300
      %1329 = vmatpush.msra.mxu0 %v1299
      %1330 = vmatpush.msra.mxu0 %v1298
      %1331 = vmatpush.msra.mxu0 %v1297
      %1332 = vmatmul.f32.gmra.mxu0 %v1314
      %v1333 = vpop.f32.mrf.mxu0
      %v1334 = vadd.f32 0.0, %v1333
      %1335 = vdwg.mxu0
      %1336 = vmatpush.msra.mxu0 %v1295
      %1337 = vmatpush.msra.mxu0 %v1294
      %1338 = vmatpush.msra.mxu0 %v1293
      %1339 = vmatpush.msra.mxu0 %v1292
      %1340 = vmatpush.msra.mxu0 %v1291
      %1341 = vmatpush.msra.mxu0 %v1290
      %1342 = vmatpush.msra.mxu0 %v1289
      %1343 = vmatpush.msra.mxu0 %v1288
      %1344 = vmatpush.msra.mxu0 %v1287
      %1345 = vmatpush.msra.mxu0 %v1286
      %1346 = vmatpush.msra.mxu0 %v1285
      %1347 = vmatpush.msra.mxu0 %v1284
      %1348 = vmatpush.msra.mxu0 %v1283
      %1349 = vmatpush.msra.mxu0 %v1282
      %1350 = vmatpush.msra.mxu0 %v1281
      %1351 = vmatpush.msra.mxu0 %v1280
      %1352 = vmatmul.f32.gmra.mxu0 %v1279
      %v1353 = vpop.f32.mrf.mxu0
      %v1354 = vadd.f32 %v1334, %v1353
      %1355 = vdwg.mxu0
      %s1356 = scalar_lea.vmem %s3, 256
      %v1357 = vld [vmem:[%s1356] sm:$0xff]
      %v1358 = vld [vmem:[%s1356 + $0x8] sm:$0xff]
      %v1359 = vld [vmem:[%s1356 + $0x10] sm:$0xff]
      %v1360 = vld [vmem:[%s1356 + $0x18] sm:$0xff]
      %v1361 = vld [vmem:[%s1356 + $0x20] sm:$0xff]
      %v1362 = vld [vmem:[%s1356 + $0x28] sm:$0xff]
      %v1363 = vld [vmem:[%s1356 + $0x30] sm:$0xff]
      %v1364 = vld [vmem:[%s1356 + $0x38] sm:$0xff]
      %v1365 = vld [vmem:[%s1356 + $0x40] sm:$0xff]
      %v1366 = vld [vmem:[%s1356 + $0x48] sm:$0xff]
      %v1367 = vld [vmem:[%s1356 + $0x50] sm:$0xff]
      %v1368 = vld [vmem:[%s1356 + $0x58] sm:$0xff]
      %v1369 = vld [vmem:[%s1356 + $0x60] sm:$0xff]
      %v1370 = vld [vmem:[%s1356 + $0x68] sm:$0xff]
      %v1371 = vld [vmem:[%s1356 + $0x70] sm:$0xff]
      %v1372 = vld [vmem:[%s1356 + $0x78] sm:$0xff]
      %v1373 = vrot.slane %v1279, 2
      %1375 = vmatpush.msra.mxu0 %v1372
      %1376 = vmatpush.msra.mxu0 %v1371
      %1377 = vmatpush.msra.mxu0 %v1370
      %1378 = vmatpush.msra.mxu0 %v1369
      %1379 = vmatpush.msra.mxu0 %v1368
      %1380 = vmatpush.msra.mxu0 %v1367
      %1381 = vmatpush.msra.mxu0 %v1366
      %1382 = vmatpush.msra.mxu0 %v1365
      %1383 = vmatpush.msra.mxu0 %v1364
      %1384 = vmatpush.msra.mxu0 %v1363
      %1385 = vmatpush.msra.mxu0 %v1362
      %1386 = vmatpush.msra.mxu0 %v1361
      %1387 = vmatpush.msra.mxu0 %v1360
      %1388 = vmatpush.msra.mxu0 %v1359
      %1389 = vmatpush.msra.mxu0 %v1358
      %1390 = vmatpush.msra.mxu0 %v1357
      %1391 = vmatmul.f32.gmra.mxu0 %v1373
      %v1392 = vpop.f32.mrf.mxu0
      %v1393 = vadd.f32 0.0, %v1392
      %1394 = vdwg.mxu0
      %v1395 = vadd.f32 %v1354, %v1393
      %s1396 = scalar_lea.vmem %s3, 384
      %v1397 = vld [vmem:[%s1396] sm:$0xff]
      %v1398 = vld [vmem:[%s1396 + $0x8] sm:$0xff]
      %v1399 = vld [vmem:[%s1396 + $0x10] sm:$0xff]
      %v1400 = vld [vmem:[%s1396 + $0x18] sm:$0xff]
      %v1401 = vld [vmem:[%s1396 + $0x20] sm:$0xff]
      %v1402 = vld [vmem:[%s1396 + $0x28] sm:$0xff]
      %v1403 = vld [vmem:[%s1396 + $0x30] sm:$0xff]
      %v1404 = vld [vmem:[%s1396 + $0x38] sm:$0xff]
      %v1405 = vld [vmem:[%s1396 + $0x40] sm:$0xff]
      %v1406 = vld [vmem:[%s1396 + $0x48] sm:$0xff]
      %v1407 = vld [vmem:[%s1396 + $0x50] sm:$0xff]
      %v1408 = vld [vmem:[%s1396 + $0x58] sm:$0xff]
      %v1409 = vld [vmem:[%s1396 + $0x60] sm:$0xff]
      %v1410 = vld [vmem:[%s1396 + $0x68] sm:$0xff]
      %v1411 = vld [vmem:[%s1396 + $0x70] sm:$0xff]
      %v1412 = vld [vmem:[%s1396 + $0x78] sm:$0xff]
      %v1413 = vrot.slane %v1279, 3
      %1415 = vmatpush.msra.mxu0 %v1412
      %1416 = vmatpush.msra.mxu0 %v1411
      %1417 = vmatpush.msra.mxu0 %v1410
      %1418 = vmatpush.msra.mxu0 %v1409
      %1419 = vmatpush.msra.mxu0 %v1408
      %1420 = vmatpush.msra.mxu0 %v1407
      %1421 = vmatpush.msra.mxu0 %v1406
      %1422 = vmatpush.msra.mxu0 %v1405
      %1423 = vmatpush.msra.mxu0 %v1404
      %1424 = vmatpush.msra.mxu0 %v1403
      %1425 = vmatpush.msra.mxu0 %v1402
      %1426 = vmatpush.msra.mxu0 %v1401
      %1427 = vmatpush.msra.mxu0 %v1400
      %1428 = vmatpush.msra.mxu0 %v1399
      %1429 = vmatpush.msra.mxu0 %v1398
      %1430 = vmatpush.msra.mxu0 %v1397
      %1431 = vmatmul.f32.gmra.mxu0 %v1413
      %v1432 = vpop.f32.mrf.mxu0
      %v1433 = vadd.f32 0.0, %v1432
      %1434 = vdwg.mxu0
      %v1435 = vadd.f32 %v1395, %v1433
      %v1436 = vld [vmem:[%s4] sm:$0x1]
      %v1437 = vadd.f32 %v1435, %v1436
      %v1438 = vlaneseq
      %v1439 = vand.u32 %v1438, 127
      %v1440 = vsub.f32 0.0, %v1437
      %v1441 = vmul.f32 %v1440, 1.442695
      %v1442 = vpow.pop %v1441
      %v1443 = vadd.f32 %v1442, 1.0
      %v1444 = vrcp.pop %v1443
      %v1445 = vmul.f32 %v1443, %v1444
      %v1446 = vsub.f32 1.0, %v1445
      %v1447 = vmul.f32 %v1444, %v1446
      %v1448 = vadd.f32 %v1444, %v1447
      %vm1449 = vweird.f32 %v1443
      %vm1450 = vweird.f32 %v1444
      %vm1451 = vmor %vm1449, %vm1450
      %v1452 = vsel %vm1451, %v1444, %v1448
      %v1453 = vand.u32 2147483647, %v1443
      %vm1454 = vcmp.eq.f32.partialorder %v1453, 8.507059e+37
      %v1455 = vand.u32 %v1443, 2147483648
      %v1456 = vor.u32 1.1754944e-38, %v1455
      %v1457 = vsel %vm1454, %v1456, %v1452
      %v1458 = vmul.f32 1.0, %v1457
      %vm1459 = vcmp.gt.f32.partialorder %v1437, 0.0
      %v1460 = vmin.f32 %v1437, 0.0
      %v1461 = vmul.f32 %v1460, 1.442695
      %v1462 = vpow.pop %v1461
      %v1463 = vsub.f32 %v1462, 1.0
      %v1464 = vmul.f32 %v1463, 10.0
      %v1465 = vsel %vm1459, %v1437, %v1464
      %vm1466 = vcmp.lt.s32.totalorder %v1439, 8
      %v1467 = vsel %vm1466, %v1458, %v1465
      %vm1468 = vcmask 122880
      %1469 = vst.msk [vmem:[%s220] sm:$0x1] %vm1468, %v1467
      %p1470 = scmp.lt.s32.totalorder %s16, 1
      %s1471 = scalar_select %p1470, %s16, 1
      %s1472 = scalar_lea.vmem %s5, %s1471
      // Predicated region
      $region41: #{autocalibration13_forward.3} parent=39 // pred_check
        %p1473 = pneg %p144
      $region42: #{autocalibration13_forward.3} parent=39 // pred_check_branch
        %1475 = sbr.rel (%p1473) target = $region44
      $region43: #{autocalibration13_forward.3} parent=39 // pred_region
        _
      $region44: #{autocalibration13_forward.3} parent=39 // pred_fallthru
        _
    $region40: #{autocalibration13_forward.3} parent=5 // pred_fallthru
      _
    %p1476 = scmp.le.s32.totalorder 2, %s11
    // Predicated region
    $region45: #{autocalibration13_forward.3} parent=5 // pred_check
      %p1477 = pneg %p1476
    $region46: #{autocalibration13_forward.3} parent=5 // pred_check_branch
      %1479 = sbr.rel (%p1477) target = $region48
    $region47: #{autocalibration13_forward.3} parent=5 // pred_region
      %s1480 = ssub.s32 %s11, 2
      // Predicated region
      $region49: #{autocalibration13_forward.3} parent=47 // pred_check
        %p1481 = pneg %p150
      $region50: #{autocalibration13_forward.3} parent=47 // pred_check_branch
        %1483 = sbr.rel (%p1481) target = $region52
      $region51: #{autocalibration13_forward.3} parent=47 // pred_region
        %p1484 = scmp.lt.s32.totalorder %s17, 1
        %s1485 = scalar_select %p1484, %s17, 1
        %s1486 = scalar_lea.vmem %s5, %s1485
      $region52: #{autocalibration13_forward.3} parent=47 // pred_fallthru
        _
    $region48: #{autocalibration13_forward.3} parent=5 // pred_fallthru
      _
  $region6: #{autocalibration13_forward.3} parent=0 // loop_footer
    %s15 = sadd.s32 1, %s11
  $region7: #{autocalibration13_forward.3} parent=0 // loop_footer_branch
    %10 = sbr.rel target = $region3
  $region8: #{autocalibration13_forward.3} parent=0 // loop_exit
    _

</llo_original>
